<compile_context>
chip_gen: v6e
topology: v6e:2x2x1
jax: 0.10.0
libtpu: 0.0.40
codegen_flags: <defaults>
</compile_context>

<pallas_src>
import functools

import jax
import jax.numpy as jnp
import numpy as np
from jax import lax
from jax.experimental import pallas as pl
from jax.experimental.pallas import tpu as pltpu

# dot_general dimension_numbers for "x @ W^T" (contract last dims, no batch dims).
_DN_RHS_T = (((1,), (1,)), ((), ()))


# ----------------------------------------------------------------------------
# Fused cross-attention kernel: one grid step == one batch element, all heads.
# ----------------------------------------------------------------------------
def _fused_cross_attention_kernel(
    tgt_ref, src_ref,
    sin_t_ref, cos_t_ref, sin_s_ref, cos_s_ref,
    wq_ref, wkv_ref, wo_ref, bo_ref,
    out_ref, attn_ref,
    *, heads, dim_head, scale,
):
    f32 = jnp.float32
    tgt = tgt_ref[0]                      # (n_tgt, dim)
    src = src_ref[0]                      # (n_src, dim)
    n_tgt = tgt.shape[0]
    n_src = src.shape[0]
    inner = heads * dim_head

    # Projections: x @ W^T via dot_general (MXU consumes W directly, no XLU transpose).
    q_all = lax.dot_general(tgt, wq_ref[...], _DN_RHS_T, preferred_element_type=f32)
    kv = lax.dot_general(src, wkv_ref[...], _DN_RHS_T, preferred_element_type=f32)
    k_all = kv[:, :inner]
    v_all = kv[:, inner:]

    # Fold softmax scale into q (cheaper than scaling the (n_tgt, n_src) dots matrix).
    q_all = q_all * scale

    sin_t, cos_t = sin_t_ref[0], cos_t_ref[0]   # (n_tgt, dim_head), sign-folded / padded
    sin_s, cos_s = sin_s_ref[0], cos_s_ref[0]   # (n_src, dim_head)

    # Hoisted parity masks for the pair swap (built once, reused for q and k, all heads).
    even_t = lax.broadcasted_iota(jnp.int32, (n_tgt, dim_head), 1) % 2 == 0
    even_s = lax.broadcasted_iota(jnp.int32, (n_src, dim_head), 1) % 2 == 0

    def swap_pairs(x, even):
        # x[:, 2i] <-> x[:, 2i+1]; the sign of rotate_every_two is already in sin.
        nxt = pltpu.roll(x, shift=dim_head - 1, axis=1)   # nxt[j] = x[(j + 1) % d]
        prv = pltpu.roll(x, shift=1, axis=1)              # prv[j] = x[(j - 1) % d]
        return jnp.where(even, nxt, prv)

    wo = wo_ref[...]                                      # (dim, inner)
    acc = jnp.zeros((n_tgt, wo.shape[0]), f32)            # output-projection accumulator

    for h in range(heads):                                # static, fully unrolled
        lo = h * dim_head
        hi = lo + dim_head
        q_h = q_all[:, lo:hi]
        k_h = k_all[:, lo:hi]
        v_h = v_all[:, lo:hi]

        # Rotary over the full head width: padded sin(=0)/cos(=1) pass extra dims through.
        q_h = q_h * cos_t + swap_pairs(q_h, even_t) * sin_t
        k_h = k_h * cos_s + swap_pairs(k_h, even_s) * sin_s

        # Single QK^T per head over the full dim_head contraction.
        dots = lax.dot_general(q_h, k_h, _DN_RHS_T, preferred_element_type=f32)
        m = jnp.max(dots, axis=-1, keepdims=True)
        e = jnp.exp(dots - m)
        denom = jnp.sum(e, axis=-1, keepdims=True)
        attn = e * pl.reciprocal(denom, approx=False)     # EUP reciprocal, VPU multiply
        attn_ref[0, h] = attn.astype(attn_ref.dtype)

        out_h = jnp.dot(attn, v_h, preferred_element_type=f32)        # (n_tgt, dim_head)
        # Output projection accumulated per head: out @ Wo^T == sum_h out_h @ Wo[:, h]^T
        acc = acc + lax.dot_general(out_h, wo[:, lo:hi], _DN_RHS_T,
                                    preferred_element_type=f32)

    out_ref[0] = (acc + bo_ref[...]).astype(out_ref.dtype)


# ----------------------------------------------------------------------------
# Wrapper: host-side sin/cos preparation (sign fold + pad) + one pallas_call.
# ----------------------------------------------------------------------------
def cross_attention_forward(params, src, src_pos_emb, tgt, tgt_pos_emb, *, heads):
    Wq, Wkv, Wo, bo = params["Wq"], params["Wkv"], params["Wo"], params["bo"]
    b, n_src, dim = src.shape
    n_tgt = tgt.shape[1]
    inner_dim = Wq.shape[0]
    dim_head = inner_dim // heads
    scale = dim_head ** (-0.5)

    sin_s, cos_s = src_pos_emb        # (b, n_src, dim_rotary)
    sin_t, cos_t = tgt_pos_emb        # (b, n_tgt, dim_rotary)
    dim_rotary = sin_s.shape[-1]
    assert dim_rotary % 2 == 0, "rotate_every_two requires an even rotary dim"
    assert dim_rotary <= dim_head

    # rot(x) * sin == swap_pairs(x) * sin_signed  with  sin_signed[2i] = -sin[2i],
    # sin_signed[2i+1] = +sin[2i+1]. Pad to dim_head so rotary is applied full-head
    # width (pass-through dims get sin=0, cos=1). No heads-fold HBM broadcast.
    sign = jnp.where(jnp.arange(dim_rotary) % 2 == 0, -1.0, 1.0).astype(sin_s.dtype)
    pad = dim_head - dim_rotary

    def prep(sin, cos):
        sin_p = jnp.pad(sin * sign, ((0, 0), (0, 0), (0, pad)), constant_values=0.0)
        cos_p = jnp.pad(cos, ((0, 0), (0, 0), (0, pad)), constant_values=1.0)
        return sin_p, cos_p

    sin_t_p, cos_t_p = prep(sin_t, cos_t)
    sin_s_p, cos_s_p = prep(sin_s, cos_s)
    bo2 = bo.reshape(1, dim)

    kernel = functools.partial(
        _fused_cross_attention_kernel, heads=heads, dim_head=dim_head, scale=scale)

    out, attn = pl.pallas_call(
        kernel,
        grid=(b,),
        in_specs=[
            pl.BlockSpec((1, n_tgt, dim), lambda i: (i, 0, 0)),        # tgt
            pl.BlockSpec((1, n_src, dim), lambda i: (i, 0, 0)),        # src
            pl.BlockSpec((1, n_tgt, dim_head), lambda i: (i, 0, 0)),   # sin_tgt (signed, padded)
            pl.BlockSpec((1, n_tgt, dim_head), lambda i: (i, 0, 0)),   # cos_tgt (padded)
            pl.BlockSpec((1, n_src, dim_head), lambda i: (i, 0, 0)),   # sin_src (signed, padded)
            pl.BlockSpec((1, n_src, dim_head), lambda i: (i, 0, 0)),   # cos_src (padded)
            pl.BlockSpec((inner_dim, dim), lambda i: (0, 0)),          # Wq   (constant block)
            pl.BlockSpec((2 * inner_dim, dim), lambda i: (0, 0)),      # Wkv  (constant block)
            pl.BlockSpec((dim, inner_dim), lambda i: (0, 0)),          # Wo   (constant block)
            pl.BlockSpec((1, dim), lambda i: (0, 0)),                  # bo
        ],
        out_specs=(
            pl.BlockSpec((1, n_tgt, dim), lambda i: (i, 0, 0)),
            pl.BlockSpec((1, heads, n_tgt, n_src), lambda i: (i, 0, 0, 0)),
        ),
        out_shape=(
            jax.ShapeDtypeStruct((b, n_tgt, dim), jnp.float32),
            jax.ShapeDtypeStruct((b, heads, n_tgt, n_src), jnp.float32),
        ),
        compiler_params=pltpu.CompilerParams(dimension_semantics=("parallel",)),
    )(tgt, src, sin_t_p, cos_t_p, sin_s_p, cos_s_p, Wq, Wkv, Wo, bo2)

    # '(b h) i j' attn layout matching the PyTorch return (leading-dim merge, free).
    attn = attn.reshape(b * heads, n_tgt, n_src)
    return out, attn


# ----------------------------------------------------------------------------
# Pure-JAX reference (mirrors the PyTorch forward) for correctness checking
# ----------------------------------------------------------------------------
def _ref_rotate_every_two(x):
    shp = x.shape
    x = x.reshape(*shp[:-1], shp[-1] // 2, 2)
    x1, x2 = x[..., 0], x[..., 1]
    return jnp.stack([-x2, x1], axis=-1).reshape(shp)


def cross_attention_ref(params, src, src_pos_emb, tgt, tgt_pos_emb, *, heads):
    Wq, Wkv, Wo, bo = params["Wq"], params["Wkv"], params["Wo"], params["bo"]
    b, n_src, dim = src.shape
    n_tgt = tgt.shape[1]
    inner_dim = Wq.shape[0]
    dim_head = inner_dim // heads
    scale = dim_head ** (-0.5)

    q = tgt @ Wq.T
    kv = src @ Wkv.T
    k, v = kv[..., :inner_dim], kv[..., inner_dim:]

    def to_heads(t, n):
        return (t.reshape(b, n, heads, dim_head).transpose(0, 2, 1, 3)
                 .reshape(b * heads, n, dim_head))

    q, k, v = to_heads(q, n_tgt), to_heads(k, n_src), to_heads(v, n_src)

    def rep(t):
        bb, nn, dd = t.shape
        return jnp.broadcast_to(t[:, None], (bb, heads, nn, dd)).reshape(bb * heads, nn, dd)

    sin_s, cos_s = map(rep, src_pos_emb)
    sin_t, cos_t = map(rep, tgt_pos_emb)
    dim_rotary = sin_s.shape[-1]

    qr, qp = q[..., :dim_rotary], q[..., dim_rotary:]
    kr, kp = k[..., :dim_rotary], k[..., dim_rotary:]
    qr = qr * cos_t + _ref_rotate_every_two(qr) * sin_t
    kr = kr * cos_s + _ref_rotate_every_two(kr) * sin_s
    q = jnp.concatenate([qr, qp], axis=-1)
    k = jnp.concatenate([kr, kp], axis=-1)

    dots = jnp.einsum("bid,bjd->bij", q, k) * scale
    attn = jax.nn.softmax(dots, axis=-1)
    out = jnp.einsum("bij,bjd->bid", attn, v)
    out = (out.reshape(b, heads, n_tgt, dim_head).transpose(0, 2, 1, 3)
              .reshape(b, n_tgt, inner_dim))
    out = out @ Wo.T + bo
    return out, attn


# ----------------------------------------------------------------------------
if __name__ == "__main__":
    # Small shapes consistent with the module
    dim = 32
    heads = 4
    dim_head = 16
    inner_dim = heads * dim_head
    dim_rotary = 8        # rotary applied to first 8 dims of each head
    b, n_src, n_tgt = 2, 16, 8

    key = jax.random.PRNGKey(0)
    ks = jax.random.split(key, 8)

    # Deterministic synthetic parameters (shapes from __init__)
    params = {
        "Wq": jax.random.normal(ks[0], (inner_dim, dim), jnp.float32) * 0.05,
        "Wkv": jax.random.normal(ks[1], (2 * inner_dim, dim), jnp.float32) * 0.05,
        "Wo": jax.random.normal(ks[2], (dim, inner_dim), jnp.float32) * 0.05,
        "bo": jax.random.normal(ks[3], (dim,), jnp.float32) * 0.05,
    }

    src = jax.random.normal(ks[4], (b, n_src, dim), jnp.float32)
    tgt = jax.random.normal(ks[5], (b, n_tgt, dim), jnp.float32)
    src_phase = jax.random.normal(ks[6], (b, n_src, dim_rotary), jnp.float32)
    tgt_phase = jax.random.normal(ks[7], (b, n_tgt, dim_rotary), jnp.float32)
    src_pos_emb = (jnp.sin(src_phase), jnp.cos(src_phase))
    tgt_pos_emb = (jnp.sin(tgt_phase), jnp.cos(tgt_phase))

    out, attn = cross_attention_forward(
        params, src, src_pos_emb, tgt, tgt_pos_emb, heads=heads
    )
    jax.block_until_ready((out, attn))

    out_ref, attn_ref = cross_attention_ref(
        params, src, src_pos_emb, tgt, tgt_pos_emb, heads=heads
    )
    np.testing.assert_allclose(np.asarray(out), np.asarray(out_ref), rtol=1e-4, atol=1e-4)
    np.testing.assert_allclose(np.asarray(attn), np.asarray(attn_ref), rtol=1e-4, atol=1e-4)

    print("KERNEL_OK")
</pallas_src>

<mosaic_0001>
module attributes {stable_mosaic.version = 11 : i64} {
  func.func @_fused_cross_attention_kernel(%arg0: i32, %arg1: memref<1x8x32xf32, #tpu.memory_space<vmem>>, %arg2: memref<1x16x32xf32, #tpu.memory_space<vmem>>, %arg3: memref<1x8x16xf32, #tpu.memory_space<vmem>>, %arg4: memref<1x8x16xf32, #tpu.memory_space<vmem>>, %arg5: memref<1x16x16xf32, #tpu.memory_space<vmem>>, %arg6: memref<1x16x16xf32, #tpu.memory_space<vmem>>, %arg7: memref<64x32xf32, #tpu.memory_space<vmem>>, %arg8: memref<128x32xf32, #tpu.memory_space<vmem>>, %arg9: memref<32x64xf32, #tpu.memory_space<vmem>>, %arg10: memref<1x32xf32, #tpu.memory_space<vmem>>, %arg11: memref<1x8x32xf32, #tpu.memory_space<vmem>>, %arg12: memref<1x4x8x16xf32, #tpu.memory_space<vmem>>) attributes {dimension_semantics = [#tpu.dimension_semantics<parallel>], iteration_bounds = array<i64: 2>, scalar_prefetch = 0 : i64, scratch_operands = 0 : i64, tpu.core_type = #tpu.core_type<tc>, window_params = [{transform_indices = @transform_0, window_bounds = array<i64: 1, 8, 32>}, {transform_indices = @transform_1, window_bounds = array<i64: 1, 16, 32>}, {transform_indices = @transform_2, window_bounds = array<i64: 1, 8, 16>}, {transform_indices = @transform_3, window_bounds = array<i64: 1, 8, 16>}, {transform_indices = @transform_4, window_bounds = array<i64: 1, 16, 16>}, {transform_indices = @transform_5, window_bounds = array<i64: 1, 16, 16>}, {pipeline_mode = #tpu.pipeline_mode<synchronous>, transform_indices = @transform_6, window_bounds = array<i64: 64, 32>}, {pipeline_mode = #tpu.pipeline_mode<synchronous>, transform_indices = @transform_7, window_bounds = array<i64: 128, 32>}, {pipeline_mode = #tpu.pipeline_mode<synchronous>, transform_indices = @transform_8, window_bounds = array<i64: 32, 64>}, {pipeline_mode = #tpu.pipeline_mode<synchronous>, transform_indices = @transform_9, window_bounds = array<i64: 1, 32>}, {transform_indices = @transform_10, window_bounds = array<i64: 1, 8, 32>}, {transform_indices = @transform_11, window_bounds = array<i64: 1, 4, 8, 16>}]} {
    %c0 = arith.constant 0 : index
    %c0_0 = arith.constant 0 : index
    %c0_1 = arith.constant 0 : index
    %0 = vector.load %arg1[%c0, %c0_0, %c0_1] : memref<1x8x32xf32, #tpu.memory_space<vmem>>, vector<1x8x32xf32>
    %1 = vector.shape_cast %0 : vector<1x8x32xf32> to vector<8x32xf32>
    %c0_2 = arith.constant 0 : index
    %c0_3 = arith.constant 0 : index
    %c0_4 = arith.constant 0 : index
    %2 = vector.load %arg2[%c0_2, %c0_3, %c0_4] : memref<1x16x32xf32, #tpu.memory_space<vmem>>, vector<1x16x32xf32>
    %3 = vector.shape_cast %2 : vector<1x16x32xf32> to vector<16x32xf32>
    %c0_5 = arith.constant 0 : index
    %c0_6 = arith.constant 0 : index
    %4 = vector.load %arg7[%c0_5, %c0_6] : memref<64x32xf32, #tpu.memory_space<vmem>>, vector<64x32xf32>
    %cst = arith.constant dense<0.000000e+00> : vector<8x64xf32>
    %5 = tpu.matmul %1, %4, %cst {dimension_numbers = #tpu.dot_dimension_numbers<[1], [1], [0], [0], [0, 0, 1, 0], [], []>} : vector<8x32xf32>, vector<64x32xf32>, vector<8x64xf32> -> vector<8x64xf32>
    %c0_7 = arith.constant 0 : index
    %c0_8 = arith.constant 0 : index
    %6 = vector.load %arg8[%c0_7, %c0_8] : memref<128x32xf32, #tpu.memory_space<vmem>>, vector<128x32xf32>
    %cst_9 = arith.constant dense<0.000000e+00> : vector<16x128xf32>
    %7 = tpu.matmul %3, %6, %cst_9 {dimension_numbers = #tpu.dot_dimension_numbers<[1], [1], [0], [0], [0, 0, 1, 0], [], []>} : vector<16x32xf32>, vector<128x32xf32>, vector<16x128xf32> -> vector<16x128xf32>
    %8 = vector.extract_strided_slice %7 {offsets = [0, 0], sizes = [16, 64], strides = [1, 1]} : vector<16x128xf32> to vector<16x64xf32>
    %9 = vector.extract_strided_slice %7 {offsets = [0, 64], sizes = [16, 64], strides = [1, 1]} : vector<16x128xf32> to vector<16x64xf32>
    %cst_10 = arith.constant 2.500000e-01 : f32
    %10 = vector.broadcast %cst_10 : f32 to vector<8x64xf32>
    %11 = arith.mulf %5, %10 : vector<8x64xf32>
    %c0_11 = arith.constant 0 : index
    %c0_12 = arith.constant 0 : index
    %c0_13 = arith.constant 0 : index
    %12 = vector.load %arg3[%c0_11, %c0_12, %c0_13] : memref<1x8x16xf32, #tpu.memory_space<vmem>>, vector<1x8x16xf32>
    %13 = vector.shape_cast %12 : vector<1x8x16xf32> to vector<8x16xf32>
    %c0_14 = arith.constant 0 : index
    %c0_15 = arith.constant 0 : index
    %c0_16 = arith.constant 0 : index
    %14 = vector.load %arg4[%c0_14, %c0_15, %c0_16] : memref<1x8x16xf32, #tpu.memory_space<vmem>>, vector<1x8x16xf32>
    %15 = vector.shape_cast %14 : vector<1x8x16xf32> to vector<8x16xf32>
    %c0_17 = arith.constant 0 : index
    %c0_18 = arith.constant 0 : index
    %c0_19 = arith.constant 0 : index
    %16 = vector.load %arg5[%c0_17, %c0_18, %c0_19] : memref<1x16x16xf32, #tpu.memory_space<vmem>>, vector<1x16x16xf32>
    %17 = vector.shape_cast %16 : vector<1x16x16xf32> to vector<16x16xf32>
    %c0_20 = arith.constant 0 : index
    %c0_21 = arith.constant 0 : index
    %c0_22 = arith.constant 0 : index
    %18 = vector.load %arg6[%c0_20, %c0_21, %c0_22] : memref<1x16x16xf32, #tpu.memory_space<vmem>>, vector<1x16x16xf32>
    %19 = vector.shape_cast %18 : vector<1x16x16xf32> to vector<16x16xf32>
    %20 = tpu.iota {dimensions = array<i32: 1>} : vector<8x16xi32>
    %c2_i32 = arith.constant 2 : i32
    %c0_i32 = arith.constant 0 : i32
    %21 = arith.cmpi eq, %c2_i32, %c0_i32 : i32
    %c1_i32 = arith.constant 1 : i32
    %22 = arith.select %21, %c1_i32, %c2_i32 : i32
    %23 = vector.broadcast %22 : i32 to vector<8x16xi32>
    %24 = arith.remsi %20, %23 : vector<8x16xi32>
    %c0_i32_23 = arith.constant 0 : i32
    %25 = vector.broadcast %c0_i32_23 : i32 to vector<8x16xi32>
    %26 = arith.cmpi ne, %24, %25 : vector<8x16xi32>
    %c0_i32_24 = arith.constant 0 : i32
    %27 = vector.broadcast %c0_i32_24 : i32 to vector<8x16xi32>
    %28 = arith.cmpi slt, %24, %27 : vector<8x16xi32>
    %c0_i32_25 = arith.constant 0 : i32
    %29 = arith.cmpi slt, %22, %c0_i32_25 : i32
    %30 = vector.broadcast %29 : i1 to vector<8x16xi1>
    %31 = vector.broadcast %30 : vector<8x16xi1> to vector<8x16xi1>
    %32 = arith.xori %28, %31 : vector<8x16xi1>
    %33 = arith.andi %32, %26 : vector<8x16xi1>
    %34 = vector.broadcast %22 : i32 to vector<8x16xi32>
    %35 = arith.addi %24, %34 : vector<8x16xi32>
    %36 = arith.select %33, %35, %24 : vector<8x16xi1>, vector<8x16xi32>
    %c0_i32_26 = arith.constant 0 : i32
    %37 = vector.broadcast %c0_i32_26 : i32 to vector<8x16xi32>
    %38 = arith.cmpi eq, %36, %37 : vector<8x16xi32>
    %39 = tpu.iota {dimensions = array<i32: 1>} : vector<16x16xi32>
    %c2_i32_27 = arith.constant 2 : i32
    %c0_i32_28 = arith.constant 0 : i32
    %40 = arith.cmpi eq, %c2_i32_27, %c0_i32_28 : i32
    %c1_i32_29 = arith.constant 1 : i32
    %41 = arith.select %40, %c1_i32_29, %c2_i32_27 : i32
    %42 = vector.broadcast %41 : i32 to vector<16x16xi32>
    %43 = arith.remsi %39, %42 : vector<16x16xi32>
    %c0_i32_30 = arith.constant 0 : i32
    %44 = vector.broadcast %c0_i32_30 : i32 to vector<16x16xi32>
    %45 = arith.cmpi ne, %43, %44 : vector<16x16xi32>
    %c0_i32_31 = arith.constant 0 : i32
    %46 = vector.broadcast %c0_i32_31 : i32 to vector<16x16xi32>
    %47 = arith.cmpi slt, %43, %46 : vector<16x16xi32>
    %c0_i32_32 = arith.constant 0 : i32
    %48 = arith.cmpi slt, %41, %c0_i32_32 : i32
    %49 = vector.broadcast %48 : i1 to vector<16x16xi1>
    %50 = vector.broadcast %49 : vector<16x16xi1> to vector<16x16xi1>
    %51 = arith.xori %47, %50 : vector<16x16xi1>
    %52 = arith.andi %51, %45 : vector<16x16xi1>
    %53 = vector.broadcast %41 : i32 to vector<16x16xi32>
    %54 = arith.addi %43, %53 : vector<16x16xi32>
    %55 = arith.select %52, %54, %43 : vector<16x16xi1>, vector<16x16xi32>
    %c0_i32_33 = arith.constant 0 : i32
    %56 = vector.broadcast %c0_i32_33 : i32 to vector<16x16xi32>
    %57 = arith.cmpi eq, %55, %56 : vector<16x16xi32>
    %c0_34 = arith.constant 0 : index
    %c0_35 = arith.constant 0 : index
    %58 = vector.load %arg9[%c0_34, %c0_35] : memref<32x64xf32, #tpu.memory_space<vmem>>, vector<32x64xf32>
    %cst_36 = arith.constant 0.000000e+00 : f32
    %59 = vector.broadcast %cst_36 : f32 to vector<8x32xf32>
    %60 = vector.extract_strided_slice %11 {offsets = [0, 0], sizes = [8, 16], strides = [1, 1]} : vector<8x64xf32> to vector<8x16xf32>
    %61 = vector.extract_strided_slice %8 {offsets = [0, 0], sizes = [16, 16], strides = [1, 1]} : vector<16x64xf32> to vector<16x16xf32>
    %62 = vector.extract_strided_slice %9 {offsets = [0, 0], sizes = [16, 16], strides = [1, 1]} : vector<16x64xf32> to vector<16x16xf32>
    %63 = arith.mulf %60, %15 : vector<8x16xf32>
    %c15_i32 = arith.constant 15 : i32
    %64 = tpu.dynamic_rotate %60 by %c15_i32 dim 1 : vector<8x16xf32>, i32 -> vector<8x16xf32>
    %c1_i32_37 = arith.constant 1 : i32
    %65 = tpu.dynamic_rotate %60 by %c1_i32_37 dim 1 : vector<8x16xf32>, i32 -> vector<8x16xf32>
    %66 = arith.select %38, %64, %65 : vector<8x16xi1>, vector<8x16xf32>
    %67 = arith.mulf %66, %13 : vector<8x16xf32>
    %68 = arith.addf %63, %67 : vector<8x16xf32>
    %69 = arith.mulf %61, %19 : vector<16x16xf32>
    %c15_i32_38 = arith.constant 15 : i32
    %70 = tpu.dynamic_rotate %61 by %c15_i32_38 dim 1 : vector<16x16xf32>, i32 -> vector<16x16xf32>
    %c1_i32_39 = arith.constant 1 : i32
    %71 = tpu.dynamic_rotate %61 by %c1_i32_39 dim 1 : vector<16x16xf32>, i32 -> vector<16x16xf32>
    %72 = arith.select %57, %70, %71 : vector<16x16xi1>, vector<16x16xf32>
    %73 = arith.mulf %72, %17 : vector<16x16xf32>
    %74 = arith.addf %69, %73 : vector<16x16xf32>
    %cst_40 = arith.constant dense<0.000000e+00> : vector<8x16xf32>
    %75 = tpu.matmul %68, %74, %cst_40 {dimension_numbers = #tpu.dot_dimension_numbers<[1], [1], [0], [0], [0, 0, 1, 0], [], []>} : vector<8x16xf32>, vector<16x16xf32>, vector<8x16xf32> -> vector<8x16xf32>
    %cst_41 = arith.constant dense<0xFF800000> : vector<8xf32>
    %76 = vector.multi_reduction <maximumf>, %75, %cst_41 [1] : vector<8x16xf32> to vector<8xf32>
    %77 = vector.shape_cast %76 : vector<8xf32> to vector<8x1xf32>
    %78 = vector.broadcast %77 : vector<8x1xf32> to vector<8x16xf32>
    %79 = arith.subf %75, %78 : vector<8x16xf32>
    %80 = math.exp %79 : vector<8x16xf32>
    %cst_42 = arith.constant dense<0.000000e+00> : vector<8xf32>
    %81 = vector.multi_reduction <add>, %80, %cst_42 [1] : vector<8x16xf32> to vector<8xf32>
    %82 = vector.shape_cast %81 : vector<8xf32> to vector<8x1xf32>
    %83 = tpu.reciprocal %82 : vector<8x1xf32> -> vector<8x1xf32>
    %84 = vector.broadcast %83 : vector<8x1xf32> to vector<8x16xf32>
    %85 = arith.mulf %80, %84 : vector<8x16xf32>
    %c0_43 = arith.constant 0 : index
    %c0_44 = arith.constant 0 : index
    %c0_45 = arith.constant 0 : index
    %c0_46 = arith.constant 0 : index
    %86 = vector.load %arg12[%c0_43, %c0_44, %c0_45, %c0_46] : memref<1x4x8x16xf32, #tpu.memory_space<vmem>>, vector<1x1x8x16xf32>
    %87 = vector.shape_cast %86 : vector<1x1x8x16xf32> to vector<8x16xf32>
    %88 = vector.shape_cast %85 : vector<8x16xf32> to vector<1x1x8x16xf32>
    tpu.vector_store %arg12[%c0_43, %c0_44, %c0_45, %c0_46], %88 {strides = array<i32>} : memref<1x4x8x16xf32, #tpu.memory_space<vmem>>, vector<1x1x8x16xf32>,
    %cst_47 = arith.constant dense<0.000000e+00> : vector<8x16xf32>
    %89 = tpu.matmul %85, %62, %cst_47 {dimension_numbers = #tpu.dot_dimension_numbers<[1], [0], [0], [1], [0, 0, 1, 1], [], []>} : vector<8x16xf32>, vector<16x16xf32>, vector<8x16xf32> -> vector<8x16xf32>
    %90 = vector.extract_strided_slice %58 {offsets = [0, 0], sizes = [32, 16], strides = [1, 1]} : vector<32x64xf32> to vector<32x16xf32>
    %cst_48 = arith.constant dense<0.000000e+00> : vector<8x32xf32>
    %91 = tpu.matmul %89, %90, %cst_48 {dimension_numbers = #tpu.dot_dimension_numbers<[1], [1], [0], [0], [0, 0, 1, 0], [], []>} : vector<8x16xf32>, vector<32x16xf32>, vector<8x32xf32> -> vector<8x32xf32>
    %92 = arith.addf %59, %91 : vector<8x32xf32>
    %93 = vector.extract_strided_slice %11 {offsets = [0, 16], sizes = [8, 16], strides = [1, 1]} : vector<8x64xf32> to vector<8x16xf32>
    %94 = vector.extract_strided_slice %8 {offsets = [0, 16], sizes = [16, 16], strides = [1, 1]} : vector<16x64xf32> to vector<16x16xf32>
    %95 = vector.extract_strided_slice %9 {offsets = [0, 16], sizes = [16, 16], strides = [1, 1]} : vector<16x64xf32> to vector<16x16xf32>
    %96 = arith.mulf %93, %15 : vector<8x16xf32>
    %c15_i32_49 = arith.constant 15 : i32
    %97 = tpu.dynamic_rotate %93 by %c15_i32_49 dim 1 : vector<8x16xf32>, i32 -> vector<8x16xf32>
    %c1_i32_50 = arith.constant 1 : i32
    %98 = tpu.dynamic_rotate %93 by %c1_i32_50 dim 1 : vector<8x16xf32>, i32 -> vector<8x16xf32>
    %99 = arith.select %38, %97, %98 : vector<8x16xi1>, vector<8x16xf32>
    %100 = arith.mulf %99, %13 : vector<8x16xf32>
    %101 = arith.addf %96, %100 : vector<8x16xf32>
    %102 = arith.mulf %94, %19 : vector<16x16xf32>
    %c15_i32_51 = arith.constant 15 : i32
    %103 = tpu.dynamic_rotate %94 by %c15_i32_51 dim 1 : vector<16x16xf32>, i32 -> vector<16x16xf32>
    %c1_i32_52 = arith.constant 1 : i32
    %104 = tpu.dynamic_rotate %94 by %c1_i32_52 dim 1 : vector<16x16xf32>, i32 -> vector<16x16xf32>
    %105 = arith.select %57, %103, %104 : vector<16x16xi1>, vector<16x16xf32>
    %106 = arith.mulf %105, %17 : vector<16x16xf32>
    %107 = arith.addf %102, %106 : vector<16x16xf32>
    %cst_53 = arith.constant dense<0.000000e+00> : vector<8x16xf32>
    %108 = tpu.matmul %101, %107, %cst_53 {dimension_numbers = #tpu.dot_dimension_numbers<[1], [1], [0], [0], [0, 0, 1, 0], [], []>} : vector<8x16xf32>, vector<16x16xf32>, vector<8x16xf32> -> vector<8x16xf32>
    %cst_54 = arith.constant dense<0xFF800000> : vector<8xf32>
    %109 = vector.multi_reduction <maximumf>, %108, %cst_54 [1] : vector<8x16xf32> to vector<8xf32>
    %110 = vector.shape_cast %109 : vector<8xf32> to vector<8x1xf32>
    %111 = vector.broadcast %110 : vector<8x1xf32> to vector<8x16xf32>
    %112 = arith.subf %108, %111 : vector<8x16xf32>
    %113 = math.exp %112 : vector<8x16xf32>
    %cst_55 = arith.constant dense<0.000000e+00> : vector<8xf32>
    %114 = vector.multi_reduction <add>, %113, %cst_55 [1] : vector<8x16xf32> to vector<8xf32>
    %115 = vector.shape_cast %114 : vector<8xf32> to vector<8x1xf32>
    %116 = tpu.reciprocal %115 : vector<8x1xf32> -> vector<8x1xf32>
    %117 = vector.broadcast %116 : vector<8x1xf32> to vector<8x16xf32>
    %118 = arith.mulf %113, %117 : vector<8x16xf32>
    %c0_56 = arith.constant 0 : index
    %c1 = arith.constant 1 : index
    %c0_57 = arith.constant 0 : index
    %c0_58 = arith.constant 0 : index
    %119 = vector.load %arg12[%c0_56, %c1, %c0_57, %c0_58] : memref<1x4x8x16xf32, #tpu.memory_space<vmem>>, vector<1x1x8x16xf32>
    %120 = vector.shape_cast %119 : vector<1x1x8x16xf32> to vector<8x16xf32>
    %121 = vector.shape_cast %118 : vector<8x16xf32> to vector<1x1x8x16xf32>
    tpu.vector_store %arg12[%c0_56, %c1, %c0_57, %c0_58], %121 {strides = array<i32>} : memref<1x4x8x16xf32, #tpu.memory_space<vmem>>, vector<1x1x8x16xf32>,
    %cst_59 = arith.constant dense<0.000000e+00> : vector<8x16xf32>
    %122 = tpu.matmul %118, %95, %cst_59 {dimension_numbers = #tpu.dot_dimension_numbers<[1], [0], [0], [1], [0, 0, 1, 1], [], []>} : vector<8x16xf32>, vector<16x16xf32>, vector<8x16xf32> -> vector<8x16xf32>
    %123 = vector.extract_strided_slice %58 {offsets = [0, 16], sizes = [32, 16], strides = [1, 1]} : vector<32x64xf32> to vector<32x16xf32>
    %cst_60 = arith.constant dense<0.000000e+00> : vector<8x32xf32>
    %124 = tpu.matmul %122, %123, %cst_60 {dimension_numbers = #tpu.dot_dimension_numbers<[1], [1], [0], [0], [0, 0, 1, 0], [], []>} : vector<8x16xf32>, vector<32x16xf32>, vector<8x32xf32> -> vector<8x32xf32>
    %125 = arith.addf %92, %124 : vector<8x32xf32>
    %126 = vector.extract_strided_slice %11 {offsets = [0, 32], sizes = [8, 16], strides = [1, 1]} : vector<8x64xf32> to vector<8x16xf32>
    %127 = vector.extract_strided_slice %8 {offsets = [0, 32], sizes = [16, 16], strides = [1, 1]} : vector<16x64xf32> to vector<16x16xf32>
    %128 = vector.extract_strided_slice %9 {offsets = [0, 32], sizes = [16, 16], strides = [1, 1]} : vector<16x64xf32> to vector<16x16xf32>
    %129 = arith.mulf %126, %15 : vector<8x16xf32>
    %c15_i32_61 = arith.constant 15 : i32
    %130 = tpu.dynamic_rotate %126 by %c15_i32_61 dim 1 : vector<8x16xf32>, i32 -> vector<8x16xf32>
    %c1_i32_62 = arith.constant 1 : i32
    %131 = tpu.dynamic_rotate %126 by %c1_i32_62 dim 1 : vector<8x16xf32>, i32 -> vector<8x16xf32>
    %132 = arith.select %38, %130, %131 : vector<8x16xi1>, vector<8x16xf32>
    %133 = arith.mulf %132, %13 : vector<8x16xf32>
    %134 = arith.addf %129, %133 : vector<8x16xf32>
    %135 = arith.mulf %127, %19 : vector<16x16xf32>
    %c15_i32_63 = arith.constant 15 : i32
    %136 = tpu.dynamic_rotate %127 by %c15_i32_63 dim 1 : vector<16x16xf32>, i32 -> vector<16x16xf32>
    %c1_i32_64 = arith.constant 1 : i32
    %137 = tpu.dynamic_rotate %127 by %c1_i32_64 dim 1 : vector<16x16xf32>, i32 -> vector<16x16xf32>
    %138 = arith.select %57, %136, %137 : vector<16x16xi1>, vector<16x16xf32>
    %139 = arith.mulf %138, %17 : vector<16x16xf32>
    %140 = arith.addf %135, %139 : vector<16x16xf32>
    %cst_65 = arith.constant dense<0.000000e+00> : vector<8x16xf32>
    %141 = tpu.matmul %134, %140, %cst_65 {dimension_numbers = #tpu.dot_dimension_numbers<[1], [1], [0], [0], [0, 0, 1, 0], [], []>} : vector<8x16xf32>, vector<16x16xf32>, vector<8x16xf32> -> vector<8x16xf32>
    %cst_66 = arith.constant dense<0xFF800000> : vector<8xf32>
    %142 = vector.multi_reduction <maximumf>, %141, %cst_66 [1] : vector<8x16xf32> to vector<8xf32>
    %143 = vector.shape_cast %142 : vector<8xf32> to vector<8x1xf32>
    %144 = vector.broadcast %143 : vector<8x1xf32> to vector<8x16xf32>
    %145 = arith.subf %141, %144 : vector<8x16xf32>
    %146 = math.exp %145 : vector<8x16xf32>
    %cst_67 = arith.constant dense<0.000000e+00> : vector<8xf32>
    %147 = vector.multi_reduction <add>, %146, %cst_67 [1] : vector<8x16xf32> to vector<8xf32>
    %148 = vector.shape_cast %147 : vector<8xf32> to vector<8x1xf32>
    %149 = tpu.reciprocal %148 : vector<8x1xf32> -> vector<8x1xf32>
    %150 = vector.broadcast %149 : vector<8x1xf32> to vector<8x16xf32>
    %151 = arith.mulf %146, %150 : vector<8x16xf32>
    %c0_68 = arith.constant 0 : index
    %c2 = arith.constant 2 : index
    %c0_69 = arith.constant 0 : index
    %c0_70 = arith.constant 0 : index
    %152 = vector.load %arg12[%c0_68, %c2, %c0_69, %c0_70] : memref<1x4x8x16xf32, #tpu.memory_space<vmem>>, vector<1x1x8x16xf32>
    %153 = vector.shape_cast %152 : vector<1x1x8x16xf32> to vector<8x16xf32>
    %154 = vector.shape_cast %151 : vector<8x16xf32> to vector<1x1x8x16xf32>
    tpu.vector_store %arg12[%c0_68, %c2, %c0_69, %c0_70], %154 {strides = array<i32>} : memref<1x4x8x16xf32, #tpu.memory_space<vmem>>, vector<1x1x8x16xf32>,
    %cst_71 = arith.constant dense<0.000000e+00> : vector<8x16xf32>
    %155 = tpu.matmul %151, %128, %cst_71 {dimension_numbers = #tpu.dot_dimension_numbers<[1], [0], [0], [1], [0, 0, 1, 1], [], []>} : vector<8x16xf32>, vector<16x16xf32>, vector<8x16xf32> -> vector<8x16xf32>
    %156 = vector.extract_strided_slice %58 {offsets = [0, 32], sizes = [32, 16], strides = [1, 1]} : vector<32x64xf32> to vector<32x16xf32>
    %cst_72 = arith.constant dense<0.000000e+00> : vector<8x32xf32>
    %157 = tpu.matmul %155, %156, %cst_72 {dimension_numbers = #tpu.dot_dimension_numbers<[1], [1], [0], [0], [0, 0, 1, 0], [], []>} : vector<8x16xf32>, vector<32x16xf32>, vector<8x32xf32> -> vector<8x32xf32>
    %158 = arith.addf %125, %157 : vector<8x32xf32>
    %159 = vector.extract_strided_slice %11 {offsets = [0, 48], sizes = [8, 16], strides = [1, 1]} : vector<8x64xf32> to vector<8x16xf32>
    %160 = vector.extract_strided_slice %8 {offsets = [0, 48], sizes = [16, 16], strides = [1, 1]} : vector<16x64xf32> to vector<16x16xf32>
    %161 = vector.extract_strided_slice %9 {offsets = [0, 48], sizes = [16, 16], strides = [1, 1]} : vector<16x64xf32> to vector<16x16xf32>
    %162 = arith.mulf %159, %15 : vector<8x16xf32>
    %c15_i32_73 = arith.constant 15 : i32
    %163 = tpu.dynamic_rotate %159 by %c15_i32_73 dim 1 : vector<8x16xf32>, i32 -> vector<8x16xf32>
    %c1_i32_74 = arith.constant 1 : i32
    %164 = tpu.dynamic_rotate %159 by %c1_i32_74 dim 1 : vector<8x16xf32>, i32 -> vector<8x16xf32>
    %165 = arith.select %38, %163, %164 : vector<8x16xi1>, vector<8x16xf32>
    %166 = arith.mulf %165, %13 : vector<8x16xf32>
    %167 = arith.addf %162, %166 : vector<8x16xf32>
    %168 = arith.mulf %160, %19 : vector<16x16xf32>
    %c15_i32_75 = arith.constant 15 : i32
    %169 = tpu.dynamic_rotate %160 by %c15_i32_75 dim 1 : vector<16x16xf32>, i32 -> vector<16x16xf32>
    %c1_i32_76 = arith.constant 1 : i32
    %170 = tpu.dynamic_rotate %160 by %c1_i32_76 dim 1 : vector<16x16xf32>, i32 -> vector<16x16xf32>
    %171 = arith.select %57, %169, %170 : vector<16x16xi1>, vector<16x16xf32>
    %172 = arith.mulf %171, %17 : vector<16x16xf32>
    %173 = arith.addf %168, %172 : vector<16x16xf32>
    %cst_77 = arith.constant dense<0.000000e+00> : vector<8x16xf32>
    %174 = tpu.matmul %167, %173, %cst_77 {dimension_numbers = #tpu.dot_dimension_numbers<[1], [1], [0], [0], [0, 0, 1, 0], [], []>} : vector<8x16xf32>, vector<16x16xf32>, vector<8x16xf32> -> vector<8x16xf32>
    %cst_78 = arith.constant dense<0xFF800000> : vector<8xf32>
    %175 = vector.multi_reduction <maximumf>, %174, %cst_78 [1] : vector<8x16xf32> to vector<8xf32>
    %176 = vector.shape_cast %175 : vector<8xf32> to vector<8x1xf32>
    %177 = vector.broadcast %176 : vector<8x1xf32> to vector<8x16xf32>
    %178 = arith.subf %174, %177 : vector<8x16xf32>
    %179 = math.exp %178 : vector<8x16xf32>
    %cst_79 = arith.constant dense<0.000000e+00> : vector<8xf32>
    %180 = vector.multi_reduction <add>, %179, %cst_79 [1] : vector<8x16xf32> to vector<8xf32>
    %181 = vector.shape_cast %180 : vector<8xf32> to vector<8x1xf32>
    %182 = tpu.reciprocal %181 : vector<8x1xf32> -> vector<8x1xf32>
    %183 = vector.broadcast %182 : vector<8x1xf32> to vector<8x16xf32>
    %184 = arith.mulf %179, %183 : vector<8x16xf32>
    %c0_80 = arith.constant 0 : index
    %c3 = arith.constant 3 : index
    %c0_81 = arith.constant 0 : index
    %c0_82 = arith.constant 0 : index
    %185 = vector.load %arg12[%c0_80, %c3, %c0_81, %c0_82] : memref<1x4x8x16xf32, #tpu.memory_space<vmem>>, vector<1x1x8x16xf32>
    %186 = vector.shape_cast %185 : vector<1x1x8x16xf32> to vector<8x16xf32>
    %187 = vector.shape_cast %184 : vector<8x16xf32> to vector<1x1x8x16xf32>
    tpu.vector_store %arg12[%c0_80, %c3, %c0_81, %c0_82], %187 {strides = array<i32>} : memref<1x4x8x16xf32, #tpu.memory_space<vmem>>, vector<1x1x8x16xf32>,
    %cst_83 = arith.constant dense<0.000000e+00> : vector<8x16xf32>
    %188 = tpu.matmul %184, %161, %cst_83 {dimension_numbers = #tpu.dot_dimension_numbers<[1], [0], [0], [1], [0, 0, 1, 1], [], []>} : vector<8x16xf32>, vector<16x16xf32>, vector<8x16xf32> -> vector<8x16xf32>
    %189 = vector.extract_strided_slice %58 {offsets = [0, 48], sizes = [32, 16], strides = [1, 1]} : vector<32x64xf32> to vector<32x16xf32>
    %cst_84 = arith.constant dense<0.000000e+00> : vector<8x32xf32>
    %190 = tpu.matmul %188, %189, %cst_84 {dimension_numbers = #tpu.dot_dimension_numbers<[1], [1], [0], [0], [0, 0, 1, 0], [], []>} : vector<8x16xf32>, vector<32x16xf32>, vector<8x32xf32> -> vector<8x32xf32>
    %191 = arith.addf %158, %190 : vector<8x32xf32>
    %c0_85 = arith.constant 0 : index
    %c0_86 = arith.constant 0 : index
    %192 = vector.load %arg10[%c0_85, %c0_86] : memref<1x32xf32, #tpu.memory_space<vmem>>, vector<1x32xf32>
    %193 = vector.broadcast %192 : vector<1x32xf32> to vector<8x32xf32>
    %194 = arith.addf %191, %193 : vector<8x32xf32>
    %c0_87 = arith.constant 0 : index
    %c0_88 = arith.constant 0 : index
    %c0_89 = arith.constant 0 : index
    %195 = vector.load %arg11[%c0_87, %c0_88, %c0_89] : memref<1x8x32xf32, #tpu.memory_space<vmem>>, vector<1x8x32xf32>
    %196 = vector.shape_cast %195 : vector<1x8x32xf32> to vector<8x32xf32>
    %197 = vector.shape_cast %194 : vector<8x32xf32> to vector<1x8x32xf32>
    tpu.vector_store %arg11[%c0_87, %c0_88, %c0_89], %197 {strides = array<i32>} : memref<1x8x32xf32, #tpu.memory_space<vmem>>, vector<1x8x32xf32>,
    return
  }
  func.func @transform_0(%arg0: i32) -> (i32, i32, i32) {
    %c0_i32 = arith.constant 0 : i32
    %c0_i32_0 = arith.constant 0 : i32
    %c0_i32_1 = arith.constant 0 : i32
    return %arg0, %c0_i32, %c0_i32_0 : i32, i32, i32
  }
  func.func @transform_1(%arg0: i32) -> (i32, i32, i32) {
    %c0_i32 = arith.constant 0 : i32
    %c0_i32_0 = arith.constant 0 : i32
    %c0_i32_1 = arith.constant 0 : i32
    return %arg0, %c0_i32, %c0_i32_0 : i32, i32, i32
  }
  func.func @transform_2(%arg0: i32) -> (i32, i32, i32) {
    %c0_i32 = arith.constant 0 : i32
    %c0_i32_0 = arith.constant 0 : i32
    %c0_i32_1 = arith.constant 0 : i32
    return %arg0, %c0_i32, %c0_i32_0 : i32, i32, i32
  }
  func.func @transform_3(%arg0: i32) -> (i32, i32, i32) {
    %c0_i32 = arith.constant 0 : i32
    %c0_i32_0 = arith.constant 0 : i32
    %c0_i32_1 = arith.constant 0 : i32
    return %arg0, %c0_i32, %c0_i32_0 : i32, i32, i32
  }
  func.func @transform_4(%arg0: i32) -> (i32, i32, i32) {
    %c0_i32 = arith.constant 0 : i32
    %c0_i32_0 = arith.constant 0 : i32
    %c0_i32_1 = arith.constant 0 : i32
    return %arg0, %c0_i32, %c0_i32_0 : i32, i32, i32
  }
  func.func @transform_5(%arg0: i32) -> (i32, i32, i32) {
    %c0_i32 = arith.constant 0 : i32
    %c0_i32_0 = arith.constant 0 : i32
    %c0_i32_1 = arith.constant 0 : i32
    return %arg0, %c0_i32, %c0_i32_0 : i32, i32, i32
  }
  func.func @transform_6(%arg0: i32) -> (i32, i32) {
    %c0_i32 = arith.constant 0 : i32
    %c0_i32_0 = arith.constant 0 : i32
    %c0_i32_1 = arith.constant 0 : i32
    return %c0_i32, %c0_i32_0 : i32, i32
  }
  func.func @transform_7(%arg0: i32) -> (i32, i32) {
    %c0_i32 = arith.constant 0 : i32
    %c0_i32_0 = arith.constant 0 : i32
    %c0_i32_1 = arith.constant 0 : i32
    return %c0_i32, %c0_i32_0 : i32, i32
  }
  func.func @transform_8(%arg0: i32) -> (i32, i32) {
    %c0_i32 = arith.constant 0 : i32
    %c0_i32_0 = arith.constant 0 : i32
    %c0_i32_1 = arith.constant 0 : i32
    return %c0_i32, %c0_i32_0 : i32, i32
  }
  func.func @transform_9(%arg0: i32) -> (i32, i32) {
    %c0_i32 = arith.constant 0 : i32
    %c0_i32_0 = arith.constant 0 : i32
    %c0_i32_1 = arith.constant 0 : i32
    return %c0_i32, %c0_i32_0 : i32, i32
  }
  func.func @transform_10(%arg0: i32) -> (i32, i32, i32) {
    %c0_i32 = arith.constant 0 : i32
    %c0_i32_0 = arith.constant 0 : i32
    %c0_i32_1 = arith.constant 0 : i32
    return %arg0, %c0_i32, %c0_i32_0 : i32, i32, i32
  }
  func.func @transform_11(%arg0: i32) -> (i32, i32, i32, i32) {
    %c0_i32 = arith.constant 0 : i32
    %c0_i32_0 = arith.constant 0 : i32
    %c0_i32_1 = arith.constant 0 : i32
    %c0_i32_2 = arith.constant 0 : i32
    return %arg0, %c0_i32, %c0_i32_0, %c0_i32_1 : i32, i32, i32, i32
  }
}

</mosaic_0001>

<llo_original>
// kernel: tpu_custom_call.1
$region0: #{tpu_custom_call.1}
  #allocation0 [shape = 'u32[]', space=smem, size = 0x4, offset = 0x4, fixed_abs, tag = 'smem constant byte address 0x4 - core index']
  #allocation1 [shape = 'u32[144,128]{1,0:T(1,128)}', space=vmem, size = 0x12000, scoped, tag = 'internal scratch']
  %s0 = inlined_call_operand.vmem [shape: f32[2,8,32], index: 0, kind: input, shape index: {}]
  %s1 = inlined_call_operand.vmem [shape: f32[2,16,32], index: 1, kind: input, shape index: {}]
  %s2 = inlined_call_operand.vmem [shape: f32[2,8,16], index: 2, kind: input, shape index: {}]
  %s3 = inlined_call_operand.vmem [shape: f32[2,8,16], index: 3, kind: input, shape index: {}]
  %s4 = inlined_call_operand.vmem [shape: f32[2,16,16], index: 4, kind: input, shape index: {}]
  %s5 = inlined_call_operand.vmem [shape: f32[2,16,16], index: 5, kind: input, shape index: {}]
  %s6 = inlined_call_operand.vmem [shape: f32[64,32], index: 6, kind: input, shape index: {}]
  %s7 = inlined_call_operand.vmem [shape: f32[128,32], index: 7, kind: input, shape index: {}]
  %s8 = inlined_call_operand.vmem [shape: f32[32,64], index: 8, kind: input, shape index: {}]
  %s9 = inlined_call_operand.vmem [shape: f32[1,32], index: 9, kind: input, shape index: {}]
  %s10 = inlined_call_operand.hbm [shape: f32[2,8,32], index: 10, kind: output, shape index: {0}]
  %s11 = inlined_call_operand.hbm [shape: f32[2,4,8,16], index: 11, kind: output, shape index: {1}]
  %12 = xla_tuple %s10, %s11
  %s13 = sld [smem:[#allocation0]]
  $region81: #{tpu_custom_call.1} parent=0
    _
  %s15 = ssub.s32 1, %s13
  %s16 = scalar_select 0, %s15, %s13
  $region1: #{tpu_custom_call.1} parent=0
    #allocation2 [shape = 'u8[8192]{0}', space=vmem, size = 0x2000, scoped, tag = 'output window, operand 0']
    #allocation3 [shape = 's32[2]{0}', space=sflag, size = 0x8, scoped, tag = 'scoped memory for tpu_custom_call.1']
    #allocation4 [shape = 'u8[32768]{0}', space=vmem, size = 0x8000, scoped, tag = 'output window, operand 1']
    #allocation5 [shape = 's32[2]{0}', space=sflag, size = 0x8, scoped, tag = 'scoped memory for tpu_custom_call.1']
    %17 = vsyncpa [#allocation3], 0
    %s18 = scalar_lea.sflag [#allocation3], 1
    %19 = vsyncpa %s18, 0
    %20 = vsyncpa [#allocation5], 0
    %s21 = scalar_lea.sflag [#allocation5], 1
    %22 = vsyncpa %s21, 0
    loop: start=0, step=1, limit=4
    $region2: #{tpu_custom_call.1} parent=1 // loop_pre_header
      _
    $region3: #{tpu_custom_call.1} parent=1 // loop_header
      %s24 = sphi 0, %s28
      %p25 = scmp.ge.s32.totalorder %s24, 4
      %s34 = sphi 0, %s36
      %s37 = sphi 0, %s34
      %s38 = sphi 0, %s37
      %s54 = sphi 0, %s38
      %s60 = sphi 0, %s62
      %s63 = sphi 0, %s60
      %s64 = sphi 0, %s63
      %s80 = sphi 0, %s64
      %s86 = sphi 0, %s88
      %s89 = sphi 0, %s86
      %s90 = sphi 0, %s89
      %s106 = sphi 0, %s90
      %s112 = sphi 0, %s114
      %s115 = sphi 0, %s112
      %s116 = sphi 0, %s115
      %s132 = sphi 0, %s116
      %s138 = sphi 0, %s140
      %s141 = sphi 0, %s138
      %s142 = sphi 0, %s141
      %s158 = sphi 0, %s142
      %s164 = sphi 0, %s166
      %s167 = sphi 0, %s164
      %s168 = sphi 0, %s167
      %s184 = sphi 0, %s168
      %s188 = sphi 0, %s188
      %s190 = sphi 0, %s188
      %s191 = sphi 0, %s190
      %s205 = sphi 0, %s191
      %s209 = sphi 0, %s209
      %s211 = sphi 0, %s209
      %s212 = sphi 0, %s211
      %s226 = sphi 0, %s212
      %s230 = sphi 0, %s230
      %s232 = sphi 0, %s230
      %s233 = sphi 0, %s232
      %s247 = sphi 0, %s233
      %s251 = sphi 0, %s251
      %s253 = sphi 0, %s251
      %s254 = sphi 0, %s253
      %s268 = sphi 0, %s254
      %s274 = sphi 0, %s276
      %s277 = sphi 0, %s274
      %s278 = sphi 0, %s277
      %s294 = sphi 0, %s278
      %s300 = sphi 0, %s302
      %s303 = sphi 0, %s300
      %s304 = sphi 0, %s303
      %s320 = sphi 0, %s304
    $region4: #{tpu_custom_call.1} parent=1 // loop_header_branch
      %27 = sbr.rel (%p25) target = $region8
    $region5: #{tpu_custom_call.1} parent=1 // loop_body
      %s29 = ssub.s32 %s24, 1
      %s30 = ssub.s32 %s24, 2
      %s31 = sadd.s32 %s24, 1
      %s32 = ssub.s32 %s24, %s31
      %p33 = scmp.eq.s32.totalorder %s32, 0
      %s35 = sadd.s32 %s34, 1
      %s36 = scalar_select %p33, %s34, %s35
      %p39 = pneg %p33
      %p40 = scmp.eq.s32.totalorder %s24, 1
      %p41 = por %p39, %p40
      %p42 = scmp.ne.s32.totalorder %s34, %s37
      %p43 = scmp.eq.s32.totalorder %s24, 0
      %p44 = por %p42, %p43
      %p45 = scmp.ne.s32.totalorder %s34, %s37
      %p46 = scmp.eq.s32.totalorder %s29, 1
      %p47 = por %p45, %p46
      %p48 = scmp.ne.s32.totalorder %s37, %s38
      %p49 = scmp.eq.s32.totalorder %s29, 0
      %p50 = por %p48, %p49
      %p51 = scmp.ne.s32.totalorder %s37, %s38
      %p52 = scmp.eq.s32.totalorder %s30, 1
      %p53 = por %p51, %p52
      %p55 = scmp.ne.s32.totalorder %s38, %s54
      %p56 = scmp.eq.s32.totalorder %s30, 0
      %p57 = por %p55, %p56
      %s58 = ssub.s32 %s24, %s31
      %p59 = scmp.eq.s32.totalorder %s58, 0
      %s61 = sadd.s32 %s60, 1
      %s62 = scalar_select %p59, %s60, %s61
      %p65 = pneg %p59
      %p66 = scmp.eq.s32.totalorder %s24, 1
      %p67 = por %p65, %p66
      %p68 = scmp.ne.s32.totalorder %s60, %s63
      %p69 = scmp.eq.s32.totalorder %s24, 0
      %p70 = por %p68, %p69
      %p71 = scmp.ne.s32.totalorder %s60, %s63
      %p72 = scmp.eq.s32.totalorder %s29, 1
      %p73 = por %p71, %p72
      %p74 = scmp.ne.s32.totalorder %s63, %s64
      %p75 = scmp.eq.s32.totalorder %s29, 0
      %p76 = por %p74, %p75
      %p77 = scmp.ne.s32.totalorder %s63, %s64
      %p78 = scmp.eq.s32.totalorder %s30, 1
      %p79 = por %p77, %p78
      %p81 = scmp.ne.s32.totalorder %s64, %s80
      %p82 = scmp.eq.s32.totalorder %s30, 0
      %p83 = por %p81, %p82
      %s84 = ssub.s32 %s24, %s31
      %p85 = scmp.eq.s32.totalorder %s84, 0
      %s87 = sadd.s32 %s86, 1
      %s88 = scalar_select %p85, %s86, %s87
      %p91 = pneg %p85
      %p92 = scmp.eq.s32.totalorder %s24, 1
      %p93 = por %p91, %p92
      %p94 = scmp.ne.s32.totalorder %s86, %s89
      %p95 = scmp.eq.s32.totalorder %s24, 0
      %p96 = por %p94, %p95
      %p97 = scmp.ne.s32.totalorder %s86, %s89
      %p98 = scmp.eq.s32.totalorder %s29, 1
      %p99 = por %p97, %p98
      %p100 = scmp.ne.s32.totalorder %s89, %s90
      %p101 = scmp.eq.s32.totalorder %s29, 0
      %p102 = por %p100, %p101
      %p103 = scmp.ne.s32.totalorder %s89, %s90
      %p104 = scmp.eq.s32.totalorder %s30, 1
      %p105 = por %p103, %p104
      %p107 = scmp.ne.s32.totalorder %s90, %s106
      %p108 = scmp.eq.s32.totalorder %s30, 0
      %p109 = por %p107, %p108
      %s110 = ssub.s32 %s24, %s31
      %p111 = scmp.eq.s32.totalorder %s110, 0
      %s113 = sadd.s32 %s112, 1
      %s114 = scalar_select %p111, %s112, %s113
      %p117 = pneg %p111
      %p118 = scmp.eq.s32.totalorder %s24, 1
      %p119 = por %p117, %p118
      %p120 = scmp.ne.s32.totalorder %s112, %s115
      %p121 = scmp.eq.s32.totalorder %s24, 0
      %p122 = por %p120, %p121
      %p123 = scmp.ne.s32.totalorder %s112, %s115
      %p124 = scmp.eq.s32.totalorder %s29, 1
      %p125 = por %p123, %p124
      %p126 = scmp.ne.s32.totalorder %s115, %s116
      %p127 = scmp.eq.s32.totalorder %s29, 0
      %p128 = por %p126, %p127
      %p129 = scmp.ne.s32.totalorder %s115, %s116
      %p130 = scmp.eq.s32.totalorder %s30, 1
      %p131 = por %p129, %p130
      %p133 = scmp.ne.s32.totalorder %s116, %s132
      %p134 = scmp.eq.s32.totalorder %s30, 0
      %p135 = por %p133, %p134
      %s136 = ssub.s32 %s24, %s31
      %p137 = scmp.eq.s32.totalorder %s136, 0
      %s139 = sadd.s32 %s138, 1
      %s140 = scalar_select %p137, %s138, %s139
      %p143 = pneg %p137
      %p144 = scmp.eq.s32.totalorder %s24, 1
      %p145 = por %p143, %p144
      %p146 = scmp.ne.s32.totalorder %s138, %s141
      %p147 = scmp.eq.s32.totalorder %s24, 0
      %p148 = por %p146, %p147
      %p149 = scmp.ne.s32.totalorder %s138, %s141
      %p150 = scmp.eq.s32.totalorder %s29, 1
      %p151 = por %p149, %p150
      %p152 = scmp.ne.s32.totalorder %s141, %s142
      %p153 = scmp.eq.s32.totalorder %s29, 0
      %p154 = por %p152, %p153
      %p155 = scmp.ne.s32.totalorder %s141, %s142
      %p156 = scmp.eq.s32.totalorder %s30, 1
      %p157 = por %p155, %p156
      %p159 = scmp.ne.s32.totalorder %s142, %s158
      %p160 = scmp.eq.s32.totalorder %s30, 0
      %p161 = por %p159, %p160
      %s162 = ssub.s32 %s24, %s31
      %p163 = scmp.eq.s32.totalorder %s162, 0
      %s165 = sadd.s32 %s164, 1
      %s166 = scalar_select %p163, %s164, %s165
      %p169 = pneg %p163
      %p170 = scmp.eq.s32.totalorder %s24, 1
      %p171 = por %p169, %p170
      %p172 = scmp.ne.s32.totalorder %s164, %s167
      %p173 = scmp.eq.s32.totalorder %s24, 0
      %p174 = por %p172, %p173
      %p175 = scmp.ne.s32.totalorder %s164, %s167
      %p176 = scmp.eq.s32.totalorder %s29, 1
      %p177 = por %p175, %p176
      %p178 = scmp.ne.s32.totalorder %s167, %s168
      %p179 = scmp.eq.s32.totalorder %s29, 0
      %p180 = por %p178, %p179
      %p181 = scmp.ne.s32.totalorder %s167, %s168
      %p182 = scmp.eq.s32.totalorder %s30, 1
      %p183 = por %p181, %p182
      %p185 = scmp.ne.s32.totalorder %s168, %s184
      %p186 = scmp.eq.s32.totalorder %s30, 0
      %p187 = por %p185, %p186
      %s189 = sadd.s32 %s188, 1
      %p192 = scmp.eq.s32.totalorder %s24, 1
      %p193 = scmp.ne.s32.totalorder %s188, %s190
      %p194 = scmp.eq.s32.totalorder %s24, 0
      %p195 = por %p193, %p194
      %p196 = scmp.ne.s32.totalorder %s188, %s190
      %p197 = scmp.eq.s32.totalorder %s29, 1
      %p198 = por %p196, %p197
      %p199 = scmp.ne.s32.totalorder %s190, %s191
      %p200 = scmp.eq.s32.totalorder %s29, 0
      %p201 = por %p199, %p200
      %p202 = scmp.ne.s32.totalorder %s190, %s191
      %p203 = scmp.eq.s32.totalorder %s30, 1
      %p204 = por %p202, %p203
      %p206 = scmp.ne.s32.totalorder %s191, %s205
      %p207 = scmp.eq.s32.totalorder %s30, 0
      %p208 = por %p206, %p207
      %s210 = sadd.s32 %s209, 1
      %p213 = scmp.eq.s32.totalorder %s24, 1
      %p214 = scmp.ne.s32.totalorder %s209, %s211
      %p215 = scmp.eq.s32.totalorder %s24, 0
      %p216 = por %p214, %p215
      %p217 = scmp.ne.s32.totalorder %s209, %s211
      %p218 = scmp.eq.s32.totalorder %s29, 1
      %p219 = por %p217, %p218
      %p220 = scmp.ne.s32.totalorder %s211, %s212
      %p221 = scmp.eq.s32.totalorder %s29, 0
      %p222 = por %p220, %p221
      %p223 = scmp.ne.s32.totalorder %s211, %s212
      %p224 = scmp.eq.s32.totalorder %s30, 1
      %p225 = por %p223, %p224
      %p227 = scmp.ne.s32.totalorder %s212, %s226
      %p228 = scmp.eq.s32.totalorder %s30, 0
      %p229 = por %p227, %p228
      %s231 = sadd.s32 %s230, 1
      %p234 = scmp.eq.s32.totalorder %s24, 1
      %p235 = scmp.ne.s32.totalorder %s230, %s232
      %p236 = scmp.eq.s32.totalorder %s24, 0
      %p237 = por %p235, %p236
      %p238 = scmp.ne.s32.totalorder %s230, %s232
      %p239 = scmp.eq.s32.totalorder %s29, 1
      %p240 = por %p238, %p239
      %p241 = scmp.ne.s32.totalorder %s232, %s233
      %p242 = scmp.eq.s32.totalorder %s29, 0
      %p243 = por %p241, %p242
      %p244 = scmp.ne.s32.totalorder %s232, %s233
      %p245 = scmp.eq.s32.totalorder %s30, 1
      %p246 = por %p244, %p245
      %p248 = scmp.ne.s32.totalorder %s233, %s247
      %p249 = scmp.eq.s32.totalorder %s30, 0
      %p250 = por %p248, %p249
      %s252 = sadd.s32 %s251, 1
      %p255 = scmp.eq.s32.totalorder %s24, 1
      %p256 = scmp.ne.s32.totalorder %s251, %s253
      %p257 = scmp.eq.s32.totalorder %s24, 0
      %p258 = por %p256, %p257
      %p259 = scmp.ne.s32.totalorder %s251, %s253
      %p260 = scmp.eq.s32.totalorder %s29, 1
      %p261 = por %p259, %p260
      %p262 = scmp.ne.s32.totalorder %s253, %s254
      %p263 = scmp.eq.s32.totalorder %s29, 0
      %p264 = por %p262, %p263
      %p265 = scmp.ne.s32.totalorder %s253, %s254
      %p266 = scmp.eq.s32.totalorder %s30, 1
      %p267 = por %p265, %p266
      %p269 = scmp.ne.s32.totalorder %s254, %s268
      %p270 = scmp.eq.s32.totalorder %s30, 0
      %p271 = por %p269, %p270
      %s272 = ssub.s32 %s24, %s31
      %p273 = scmp.eq.s32.totalorder %s272, 0
      %s275 = sadd.s32 %s274, 1
      %s276 = scalar_select %p273, %s274, %s275
      %p279 = pneg %p273
      %p280 = scmp.eq.s32.totalorder %s24, 1
      %p281 = por %p279, %p280
      %p282 = scmp.ne.s32.totalorder %s274, %s277
      %p283 = scmp.eq.s32.totalorder %s24, 0
      %p284 = por %p282, %p283
      %p285 = scmp.ne.s32.totalorder %s274, %s277
      %p286 = scmp.eq.s32.totalorder %s29, 1
      %p287 = por %p285, %p286
      %p288 = scmp.ne.s32.totalorder %s277, %s278
      %p289 = scmp.eq.s32.totalorder %s29, 0
      %p290 = por %p288, %p289
      %p291 = scmp.ne.s32.totalorder %s277, %s278
      %p292 = scmp.eq.s32.totalorder %s30, 1
      %p293 = por %p291, %p292
      %p295 = scmp.ne.s32.totalorder %s278, %s294
      %p296 = scmp.eq.s32.totalorder %s30, 0
      %p297 = por %p295, %p296
      %s298 = ssub.s32 %s24, %s31
      %p299 = scmp.eq.s32.totalorder %s298, 0
      %s301 = sadd.s32 %s300, 1
      %s302 = scalar_select %p299, %s300, %s301
      %p305 = pneg %p299
      %p306 = scmp.eq.s32.totalorder %s24, 1
      %p307 = por %p305, %p306
      %p308 = scmp.ne.s32.totalorder %s300, %s303
      %p309 = scmp.eq.s32.totalorder %s24, 0
      %p310 = por %p308, %p309
      %p311 = scmp.ne.s32.totalorder %s300, %s303
      %p312 = scmp.eq.s32.totalorder %s29, 1
      %p313 = por %p311, %p312
      %p314 = scmp.ne.s32.totalorder %s303, %s304
      %p315 = scmp.eq.s32.totalorder %s29, 0
      %p316 = por %p314, %p315
      %p317 = scmp.ne.s32.totalorder %s303, %s304
      %p318 = scmp.eq.s32.totalorder %s30, 1
      %p319 = por %p317, %p318
      %p321 = scmp.ne.s32.totalorder %s304, %s320
      %p322 = scmp.eq.s32.totalorder %s30, 0
      %p323 = por %p321, %p322
      %p324 = scmp.le.s32.totalorder 1, %s24
      %p325 = scmp.lt.s32.totalorder %s24, 3
      %p326 = pnand %p324, %p325
      %p327 = pneg %p326
      // Predicated region
      $region9: #{tpu_custom_call.1} parent=5 // pred_check
        _
      $region10: #{tpu_custom_call.1} parent=5 // pred_check_branch
        %329 = sbr.rel (%p326) target = $region12
      $region11: #{tpu_custom_call.1} parent=5 // pred_region
        %s330 = ssub.s32 %s24, 1
        // Predicated region
        $region13: #{tpu_custom_call.1} parent=11 // pred_check
          %p331 = pneg %p201
        $region14: #{tpu_custom_call.1} parent=11 // pred_check_branch
          %333 = sbr.rel (%p331) target = $region16
        $region15: #{tpu_custom_call.1} parent=11 // pred_region
          _
        $region16: #{tpu_custom_call.1} parent=11 // pred_fallthru
          _
        // Predicated region
        $region17: #{tpu_custom_call.1} parent=11 // pred_check
          %p334 = pneg %p222
        $region18: #{tpu_custom_call.1} parent=11 // pred_check_branch
          %336 = sbr.rel (%p334) target = $region20
        $region19: #{tpu_custom_call.1} parent=11 // pred_region
          _
        $region20: #{tpu_custom_call.1} parent=11 // pred_fallthru
          _
        // Predicated region
        $region21: #{tpu_custom_call.1} parent=11 // pred_check
          %p337 = pneg %p243
        $region22: #{tpu_custom_call.1} parent=11 // pred_check_branch
          %339 = sbr.rel (%p337) target = $region24
        $region23: #{tpu_custom_call.1} parent=11 // pred_region
          _
        $region24: #{tpu_custom_call.1} parent=11 // pred_fallthru
          _
        // Predicated region
        $region25: #{tpu_custom_call.1} parent=11 // pred_check
          %p340 = pneg %p264
        $region26: #{tpu_custom_call.1} parent=11 // pred_check_branch
          %342 = sbr.rel (%p340) target = $region28
        $region27: #{tpu_custom_call.1} parent=11 // pred_region
          _
        $region28: #{tpu_custom_call.1} parent=11 // pred_fallthru
          _
      $region12: #{tpu_custom_call.1} parent=5 // pred_fallthru
        _
      %p343 = scmp.lt.s32.totalorder %s24, 2
      // Predicated region
      $region29: #{tpu_custom_call.1} parent=5 // pred_check
        %p344 = pneg %p343
      $region30: #{tpu_custom_call.1} parent=5 // pred_check_branch
        %346 = sbr.rel (%p344) target = $region32
      $region31: #{tpu_custom_call.1} parent=5 // pred_region
        // Predicated region
        $region33: #{tpu_custom_call.1} parent=31 // pred_check
          %p347 = pneg %p44
        $region34: #{tpu_custom_call.1} parent=31 // pred_check_branch
          %349 = sbr.rel (%p347) target = $region36
        $region35: #{tpu_custom_call.1} parent=31 // pred_region
          %p350 = scmp.lt.s32.totalorder %s24, 1
          %s351 = scalar_select %p350, %s24, 1
          %s352 = smul.addr %s351, 8
          %s353 = scalar_lea.vmem %s0, %s352
        $region36: #{tpu_custom_call.1} parent=31 // pred_fallthru
          _
        // Predicated region
        $region37: #{tpu_custom_call.1} parent=31 // pred_check
          %p354 = pneg %p70
        $region38: #{tpu_custom_call.1} parent=31 // pred_check_branch
          %356 = sbr.rel (%p354) target = $region40
        $region39: #{tpu_custom_call.1} parent=31 // pred_region
          %p357 = scmp.lt.s32.totalorder %s24, 1
          %s358 = scalar_select %p357, %s24, 1
          %s359 = smul.addr %s358, 2
          %s360 = smul.addr %s359, 8
          %s361 = scalar_lea.vmem %s1, %s360
        $region40: #{tpu_custom_call.1} parent=31 // pred_fallthru
          _
        // Predicated region
        $region41: #{tpu_custom_call.1} parent=31 // pred_check
          %p362 = pneg %p96
        $region42: #{tpu_custom_call.1} parent=31 // pred_check_branch
          %364 = sbr.rel (%p362) target = $region44
        $region43: #{tpu_custom_call.1} parent=31 // pred_region
          %p365 = scmp.lt.s32.totalorder %s24, 1
          %s366 = scalar_select %p365, %s24, 1
          %s367 = smul.addr %s366, 8
          %s368 = scalar_lea.vmem %s2, %s367
        $region44: #{tpu_custom_call.1} parent=31 // pred_fallthru
          _
        // Predicated region
        $region45: #{tpu_custom_call.1} parent=31 // pred_check
          %p369 = pneg %p122
        $region46: #{tpu_custom_call.1} parent=31 // pred_check_branch
          %371 = sbr.rel (%p369) target = $region48
        $region47: #{tpu_custom_call.1} parent=31 // pred_region
          %p372 = scmp.lt.s32.totalorder %s24, 1
          %s373 = scalar_select %p372, %s24, 1
          %s374 = smul.addr %s373, 8
          %s375 = scalar_lea.vmem %s3, %s374
        $region48: #{tpu_custom_call.1} parent=31 // pred_fallthru
          _
        // Predicated region
        $region49: #{tpu_custom_call.1} parent=31 // pred_check
          %p376 = pneg %p148
        $region50: #{tpu_custom_call.1} parent=31 // pred_check_branch
          %378 = sbr.rel (%p376) target = $region52
        $region51: #{tpu_custom_call.1} parent=31 // pred_region
          %p379 = scmp.lt.s32.totalorder %s24, 1
          %s380 = scalar_select %p379, %s24, 1
          %s381 = smul.addr %s380, 2
          %s382 = smul.addr %s381, 8
          %s383 = scalar_lea.vmem %s4, %s382
        $region52: #{tpu_custom_call.1} parent=31 // pred_fallthru
          _
        // Predicated region
        $region53: #{tpu_custom_call.1} parent=31 // pred_check
          %p384 = pneg %p174
        $region54: #{tpu_custom_call.1} parent=31 // pred_check_branch
          %386 = sbr.rel (%p384) target = $region56
        $region55: #{tpu_custom_call.1} parent=31 // pred_region
          %p387 = scmp.lt.s32.totalorder %s24, 1
          %s388 = scalar_select %p387, %s24, 1
          %s389 = smul.addr %s388, 2
          %s390 = smul.addr %s389, 8
          %s391 = scalar_lea.vmem %s5, %s390
        $region56: #{tpu_custom_call.1} parent=31 // pred_fallthru
          _
      $region32: #{tpu_custom_call.1} parent=5 // pred_fallthru
        _
      %p392 = scmp.le.s32.totalorder 1, %s24
      %p393 = scmp.lt.s32.totalorder %s24, 3
      %p394 = pnand %p392, %p393
      %p395 = pneg %p394
      // Predicated region
      $region57: #{tpu_custom_call.1} parent=5 // pred_check
        _
      $region58: #{tpu_custom_call.1} parent=5 // pred_check_branch
        %397 = sbr.rel (%p394) target = $region60
      $region59: #{tpu_custom_call.1} parent=5 // pred_region
        %s398 = ssub.s32 %s24, 1
        %p399 = scmp.lt.s32.totalorder %s29, 1
        %s400 = scalar_select %p399, %s29, 1
        %s401 = smul.addr %s400, 8
        %s402 = scalar_lea.vmem %s0, %s401
        %p403 = pneg %p50
        %p404 = pneg %p47
        %p405 = scmp.lt.s32.totalorder %s29, 1
        %s406 = scalar_select %p405, %s29, 1
        %s407 = smul.addr %s406, 2
        %s408 = smul.addr %s407, 8
        %s409 = scalar_lea.vmem %s1, %s408
        %p410 = pneg %p76
        %p411 = pneg %p73
        %p412 = scmp.lt.s32.totalorder %s29, 1
        %s413 = scalar_select %p412, %s29, 1
        %s414 = smul.addr %s413, 8
        %s415 = scalar_lea.vmem %s2, %s414
        %p416 = pneg %p102
        %p417 = pneg %p99
        %p418 = scmp.lt.s32.totalorder %s29, 1
        %s419 = scalar_select %p418, %s29, 1
        %s420 = smul.addr %s419, 8
        %s421 = scalar_lea.vmem %s3, %s420
        %p422 = pneg %p128
        %p423 = pneg %p125
        %p424 = scmp.lt.s32.totalorder %s29, 1
        %s425 = scalar_select %p424, %s29, 1
        %s426 = smul.addr %s425, 2
        %s427 = smul.addr %s426, 8
        %s428 = scalar_lea.vmem %s4, %s427
        %p429 = pneg %p154
        %p430 = pneg %p151
        %p431 = scmp.lt.s32.totalorder %s29, 1
        %s432 = scalar_select %p431, %s29, 1
        %s433 = smul.addr %s432, 2
        %s434 = smul.addr %s433, 8
        %s435 = scalar_lea.vmem %s5, %s434
        %p436 = pneg %p180
        %p437 = pneg %p177
        %p438 = pneg %p201
        %p439 = pneg %p198
        %p440 = pneg %p222
        %p441 = pneg %p219
        %p442 = pneg %p243
        %p443 = pneg %p240
        %p444 = pneg %p264
        %p445 = pneg %p261
        %p446 = pneg %p290
        %p447 = pneg %p287
        %s448 = sand.u32 %s277, 1
        %s449 = scalar_lea.sflag [#allocation3], %s448
        %s450 = sand.u32 %s277, 1
        %s451 = smul.addr %s450, 8
        %s452 = scalar_lea.vmem [#allocation2], %s451
        %p453 = pneg %p316
        %p454 = pneg %p313
        %s455 = sand.u32 %s303, 1
        %s456 = scalar_lea.sflag [#allocation5], %s455
        %s457 = sand.u32 %s303, 1
        %s458 = smul.addr %s457, 32
        %s459 = scalar_lea.vmem [#allocation4], %s458
        %p460 = scmp.lt.s32.totalorder %s29, 1
        %s461 = scalar_select %p460, %s29, 1
        %s462 = smul.addr %s461, 8
        %s463 = scalar_lea.vmem %s0, %s462
        %p464 = scmp.lt.s32.totalorder %s29, 1
        %s465 = scalar_select %p464, %s29, 1
        %s466 = smul.addr %s465, 2
        %s467 = smul.addr %s466, 8
        %s468 = scalar_lea.vmem %s1, %s467
        %p469 = scmp.lt.s32.totalorder %s29, 1
        %s470 = scalar_select %p469, %s29, 1
        %s471 = smul.addr %s470, 8
        %s472 = scalar_lea.vmem %s2, %s471
        %p473 = scmp.lt.s32.totalorder %s29, 1
        %s474 = scalar_select %p473, %s29, 1
        %s475 = smul.addr %s474, 8
        %s476 = scalar_lea.vmem %s3, %s475
        %p477 = scmp.lt.s32.totalorder %s29, 1
        %s478 = scalar_select %p477, %s29, 1
        %s479 = smul.addr %s478, 2
        %s480 = smul.addr %s479, 8
        %s481 = scalar_lea.vmem %s4, %s480
        %p482 = scmp.lt.s32.totalorder %s29, 1
        %s483 = scalar_select %p482, %s29, 1
        %s484 = smul.addr %s483, 2
        %s485 = smul.addr %s484, 8
        %s486 = scalar_lea.vmem %s5, %s485
        %v487 = vld [vmem:[%s463] sm:$0xff]
        %v488 = vld [vmem:[%s468] sm:$0xff]
        %v489 = vld [vmem:[%s468 + $0x8] sm:$0xff]
        %v490 = vld [vmem:[%s6] sm:$0xff]
        %v491 = vld [vmem:[%s6 + $0x8] sm:$0xff]
        %v492 = vld [vmem:[%s6 + $0x10] sm:$0xff]
        %v493 = vld [vmem:[%s6 + $0x18] sm:$0xff]
        %v494 = vld [vmem:[%s6 + $0x20] sm:$0xff]
        %v495 = vld [vmem:[%s6 + $0x28] sm:$0xff]
        %v496 = vld [vmem:[%s6 + $0x30] sm:$0xff]
        %v497 = vld [vmem:[%s6 + $0x38] sm:$0xff]
        %vm498 = vcmask 261120
        %v500 = vsel %vm498, %v487, 0
        %v503 = vsel %vm498, %v490, 0
        %v506 = vsel %vm498, %v491, 0
        %v509 = vsel %vm498, %v492, 0
        %v512 = vsel %vm498, %v493, 0
        %v515 = vsel %vm498, %v494, 0
        %v518 = vsel %vm498, %v495, 0
        %v521 = vsel %vm498, %v496, 0
        %v524 = vsel %vm498, %v497, 0
        %526 = vmatprep.subr.mxu0 0.0
        %527 = vmatpush1.xpose.msra.mxu0 0.0
        %528 = vmatprep.subr.mxu0 0.0
        %529 = vmatpush1.xpose.msra.mxu0 0.0
        %530 = vmatprep.subr.mxu0 0.0
        %531 = vmatpush1.xpose.msra.mxu0 0.0
        %532 = vmatprep.subr.mxu0 0.0
        %533 = vmatpush1.xpose.msra.mxu0 0.0
        %534 = vmatprep.subr.mxu0 0.0
        %535 = vmatpush1.xpose.msra.mxu0 0.0
        %536 = vmatprep.subr.mxu0 0.0
        %537 = vmatpush1.xpose.msra.mxu0 0.0
        %538 = vmatprep.subr.mxu0 0.0
        %539 = vmatpush1.xpose.msra.mxu0 0.0
        %540 = vmatprep.subr.mxu0 0.0
        %541 = vmatpush1.xpose.msra.mxu0 0.0
        %542 = vmatprep.subr.mxu0 0.0
        %543 = vmatpush1.xpose.msra.mxu0 %v524
        %544 = vmatprep.subr.mxu0 0.0
        %545 = vmatpush1.xpose.msra.mxu0 %v521
        %546 = vmatprep.subr.mxu0 0.0
        %547 = vmatpush1.xpose.msra.mxu0 %v518
        %548 = vmatprep.subr.mxu0 0.0
        %549 = vmatpush1.xpose.msra.mxu0 %v515
        %550 = vmatprep.subr.mxu0 0.0
        %551 = vmatpush1.xpose.msra.mxu0 %v512
        %552 = vmatprep.subr.mxu0 0.0
        %553 = vmatpush1.xpose.msra.mxu0 %v509
        %554 = vmatprep.subr.mxu0 0.0
        %555 = vmatpush1.xpose.msra.mxu0 %v506
        %556 = vmatprep.subr.mxu0 0.0
        %557 = vmatpush1.xpose.msra.mxu0 %v503
        %558 = vmatprep.subr.mxu0 0.0
        %559 = vmatpush2.xpose.msra.mxu0 0.0
        %560 = vmatprep.subr.mxu0 0.0
        %561 = vmatpush2.xpose.msra.mxu0 0.0
        %562 = vmatprep.subr.mxu0 0.0
        %563 = vmatpush2.xpose.msra.mxu0 0.0
        %564 = vmatprep.subr.mxu0 0.0
        %565 = vmatpush2.xpose.msra.mxu0 0.0
        %566 = vmatprep.subr.mxu0 0.0
        %567 = vmatpush2.xpose.msra.mxu0 0.0
        %568 = vmatprep.subr.mxu0 0.0
        %569 = vmatpush2.xpose.msra.mxu0 0.0
        %570 = vmatprep.subr.mxu0 0.0
        %571 = vmatpush2.xpose.msra.mxu0 0.0
        %572 = vmatprep.subr.mxu0 0.0
        %573 = vmatpush2.xpose.msra.mxu0 0.0
        %574 = vmatprep.subr.mxu0 0.0
        %575 = vmatpush2.xpose.msra.mxu0 0.0
        %576 = vmatprep.subr.mxu0 0.0
        %577 = vmatpush2.xpose.msra.mxu0 0.0
        %578 = vmatprep.subr.mxu0 0.0
        %579 = vmatpush2.xpose.msra.mxu0 0.0
        %580 = vmatprep.subr.mxu0 0.0
        %581 = vmatpush2.xpose.msra.mxu0 0.0
        %582 = vmatprep.subr.mxu0 0.0
        %583 = vmatpush2.xpose.msra.mxu0 0.0
        %584 = vmatprep.subr.mxu0 0.0
        %585 = vmatpush2.xpose.msra.mxu0 0.0
        %586 = vmatprep.subr.mxu0 0.0
        %587 = vmatpush2.xpose.msra.mxu0 0.0
        %588 = vmatprep.subr.mxu0 0.0
        %589 = vmatpush2.xpose.msra.mxu0 0.0
        %590 = vmatprep.mubr.f32.mxu0 0.0
        %591 = vmatmul.mubr.f32.gmra.mxu0 %v500
        %v592 = vpop.f32.mrf.mxu0
        %v593 = vadd.f32 0.0, %v592
        %v594 = vpop.f32.mrf.mxu0
        %595 = vdwg.mxu0
        %v596 = vld [vmem:[%s7] sm:$0xff]
        %v597 = vld [vmem:[%s7 + $0x8] sm:$0xff]
        %v598 = vld [vmem:[%s7 + $0x10] sm:$0xff]
        %v599 = vld [vmem:[%s7 + $0x18] sm:$0xff]
        %v600 = vld [vmem:[%s7 + $0x20] sm:$0xff]
        %v601 = vld [vmem:[%s7 + $0x28] sm:$0xff]
        %v602 = vld [vmem:[%s7 + $0x30] sm:$0xff]
        %v603 = vld [vmem:[%s7 + $0x38] sm:$0xff]
        %v604 = vld [vmem:[%s7 + $0x40] sm:$0xff]
        %v605 = vld [vmem:[%s7 + $0x48] sm:$0xff]
        %v606 = vld [vmem:[%s7 + $0x50] sm:$0xff]
        %v607 = vld [vmem:[%s7 + $0x58] sm:$0xff]
        %v608 = vld [vmem:[%s7 + $0x60] sm:$0xff]
        %v609 = vld [vmem:[%s7 + $0x68] sm:$0xff]
        %v610 = vld [vmem:[%s7 + $0x70] sm:$0xff]
        %v611 = vld [vmem:[%s7 + $0x78] sm:$0xff]
        %v613 = vsel %vm498, %v488, 0
        %v616 = vsel %vm498, %v489, 0
        %v619 = vsel %vm498, %v596, 0
        %v622 = vsel %vm498, %v597, 0
        %v625 = vsel %vm498, %v598, 0
        %v628 = vsel %vm498, %v599, 0
        %v631 = vsel %vm498, %v600, 0
        %v634 = vsel %vm498, %v601, 0
        %v637 = vsel %vm498, %v602, 0
        %v640 = vsel %vm498, %v603, 0
        %v643 = vsel %vm498, %v604, 0
        %v646 = vsel %vm498, %v605, 0
        %v649 = vsel %vm498, %v606, 0
        %v652 = vsel %vm498, %v607, 0
        %v655 = vsel %vm498, %v608, 0
        %v658 = vsel %vm498, %v609, 0
        %v661 = vsel %vm498, %v610, 0
        %v664 = vsel %vm498, %v611, 0
        %666 = vmatprep.subr.mxu0 0.0
        %667 = vmatpush1.xpose.msra.mxu0 %v664
        %668 = vmatprep.subr.mxu0 0.0
        %669 = vmatpush1.xpose.msra.mxu0 %v661
        %670 = vmatprep.subr.mxu0 0.0
        %671 = vmatpush1.xpose.msra.mxu0 %v658
        %672 = vmatprep.subr.mxu0 0.0
        %673 = vmatpush1.xpose.msra.mxu0 %v655
        %674 = vmatprep.subr.mxu0 0.0
        %675 = vmatpush1.xpose.msra.mxu0 %v652
        %676 = vmatprep.subr.mxu0 0.0
        %677 = vmatpush1.xpose.msra.mxu0 %v649
        %678 = vmatprep.subr.mxu0 0.0
        %679 = vmatpush1.xpose.msra.mxu0 %v646
        %680 = vmatprep.subr.mxu0 0.0
        %681 = vmatpush1.xpose.msra.mxu0 %v643
        %682 = vmatprep.subr.mxu0 0.0
        %683 = vmatpush1.xpose.msra.mxu0 %v640
        %684 = vmatprep.subr.mxu0 0.0
        %685 = vmatpush1.xpose.msra.mxu0 %v637
        %686 = vmatprep.subr.mxu0 0.0
        %687 = vmatpush1.xpose.msra.mxu0 %v634
        %688 = vmatprep.subr.mxu0 0.0
        %689 = vmatpush1.xpose.msra.mxu0 %v631
        %690 = vmatprep.subr.mxu0 0.0
        %691 = vmatpush1.xpose.msra.mxu0 %v628
        %692 = vmatprep.subr.mxu0 0.0
        %693 = vmatpush1.xpose.msra.mxu0 %v625
        %694 = vmatprep.subr.mxu0 0.0
        %695 = vmatpush1.xpose.msra.mxu0 %v622
        %696 = vmatprep.subr.mxu0 0.0
        %697 = vmatpush1.xpose.msra.mxu0 %v619
        %698 = vmatprep.subr.mxu0 0.0
        %699 = vmatpush2.xpose.msra.mxu0 0.0
        %700 = vmatprep.subr.mxu0 0.0
        %701 = vmatpush2.xpose.msra.mxu0 0.0
        %702 = vmatprep.subr.mxu0 0.0
        %703 = vmatpush2.xpose.msra.mxu0 0.0
        %704 = vmatprep.subr.mxu0 0.0
        %705 = vmatpush2.xpose.msra.mxu0 0.0
        %706 = vmatprep.subr.mxu0 0.0
        %707 = vmatpush2.xpose.msra.mxu0 0.0
        %708 = vmatprep.subr.mxu0 0.0
        %709 = vmatpush2.xpose.msra.mxu0 0.0
        %710 = vmatprep.subr.mxu0 0.0
        %711 = vmatpush2.xpose.msra.mxu0 0.0
        %712 = vmatprep.subr.mxu0 0.0
        %713 = vmatpush2.xpose.msra.mxu0 0.0
        %714 = vmatprep.subr.mxu0 0.0
        %715 = vmatpush2.xpose.msra.mxu0 0.0
        %716 = vmatprep.subr.mxu0 0.0
        %717 = vmatpush2.xpose.msra.mxu0 0.0
        %718 = vmatprep.subr.mxu0 0.0
        %719 = vmatpush2.xpose.msra.mxu0 0.0
        %720 = vmatprep.subr.mxu0 0.0
        %721 = vmatpush2.xpose.msra.mxu0 0.0
        %722 = vmatprep.subr.mxu0 0.0
        %723 = vmatpush2.xpose.msra.mxu0 0.0
        %724 = vmatprep.subr.mxu0 0.0
        %725 = vmatpush2.xpose.msra.mxu0 0.0
        %726 = vmatprep.subr.mxu0 0.0
        %727 = vmatpush2.xpose.msra.mxu0 0.0
        %728 = vmatprep.subr.mxu0 0.0
        %729 = vmatpush2.xpose.msra.mxu0 0.0
        %730 = vmatprep.mubr.f32.mxu0 0.0
        %731 = vmatmul.mubr.f32.gmra.mxu0 %v613
        %v732 = vpop.f32.mrf.mxu0
        %v733 = vadd.f32 0.0, %v732
        %v734 = vpop.f32.mrf.mxu0
        %735 = vmatprep.mubr.f32.mxu0 0.0
        %736 = vmatmul.mubr.f32.gmra.mxu0 %v616
        %v737 = vpop.f32.mrf.mxu0
        %v738 = vadd.f32 0.0, %v737
        %v739 = vpop.f32.mrf.mxu0
        %740 = vdwg.mxu0
        %v741 = vmul.f32 %v593, 0.25
        %v742 = vld [vmem:[%s472] sm:$0xff]
        %v743 = vld [vmem:[%s476] sm:$0xff]
        %v744 = vld [vmem:[%s481] sm:$0xff]
        %v745 = vld [vmem:[%s481 + $0x8] sm:$0xff]
        %v746 = vld [vmem:[%s486] sm:$0xff]
        %v747 = vld [vmem:[%s486 + $0x8] sm:$0xff]
        %v748 = vlaneseq
        %v749 = vand.u32 %v748, 127
        %vm750 = vcmp.lt.s32.totalorder %v749, 0
        %v751 = vsub.s32 0, %v749
        %v752 = vsel %vm750, %v751, %v749
        %v753 = vshrl.u32 %v752, 1
        %v754 = vand.u32 %v752, 1
        %v755 = vsub.s32 0, %v754
        %v756 = vsel %vm750, %v755, %v754
        %vm757 = vcmp.ne.s32.totalorder %v756, 0
        %vm758 = vcmp.lt.s32.totalorder %v756, 0
        %vm759 = vmand %vm758, %vm757
        %v760 = vadd.s32 %v756, 2
        %v761 = vsel %vm759, %v760, %v756
        %vm762 = vcmp.eq.s32.totalorder %v761, 0
        %v763 = vld [vmem:[%s8] sm:$0xff]
        %v764 = vld [vmem:[%s8 + $0x8] sm:$0xff]
        %v765 = vld [vmem:[%s8 + $0x10] sm:$0xff]
        %v766 = vld [vmem:[%s8 + $0x18] sm:$0xff]
        %v767 = vmul.f32 %v741, %v743
        %vm768 = vcmask 1047680
        %769 = vrot.lane.b32.xlu0 %v741, 16
        %v770 = vpop.permute.xlu0 %769
        %v771 = vsel %vm768, %v770, %v741
        %772 = vrot.lane.b32.xlu0 %v771, 16
        %v773 = vpop.permute.xlu0 %772
        %v774 = vsel %vm768, %v773, %v741
        %776 = vrot.lane.b32.xlu0 %v774, 127
        %v777 = vpop.permute.xlu0 %776
        %779 = vrot.lane.b32.xlu0 %v774, 113
        %v780 = vpop.permute.xlu0 %779
        %v782 = vsel %vm762, %v777, %v780
        %v783 = vmul.f32 %v782, %v742
        %v784 = vadd.f32 %v767, %v783
        %v785 = vmul.f32 %v733, %v746
        %v786 = vmul.f32 %v738, %v747
        %787 = vrot.lane.b32.xlu0 %v733, 16
        %v788 = vpop.permute.xlu0 %787
        %v789 = vsel %vm768, %v788, %v733
        %790 = vrot.lane.b32.xlu0 %v738, 16
        %v791 = vpop.permute.xlu0 %790
        %v792 = vsel %vm768, %v791, %v738
        %793 = vrot.lane.b32.xlu0 %v789, 16
        %v794 = vpop.permute.xlu0 %793
        %795 = vrot.lane.b32.xlu0 %v792, 16
        %v796 = vpop.permute.xlu0 %795
        %v797 = vsel %vm768, %v794, %v733
        %v798 = vsel %vm768, %v796, %v738
        %801 = vrot.lane.b32.xlu0 %v797, 127
        %v802 = vpop.permute.xlu0 %801
        %803 = vrot.lane.b32.xlu0 %v798, 127
        %v804 = vpop.permute.xlu0 %803
        %807 = vrot.lane.b32.xlu0 %v797, 113
        %v808 = vpop.permute.xlu0 %807
        %809 = vrot.lane.b32.xlu0 %v798, 113
        %v810 = vpop.permute.xlu0 %809
        %v813 = vsel %vm762, %v802, %v808
        %v814 = vsel %vm762, %v804, %v810
        %v815 = vmul.f32 %v813, %v744
        %v816 = vmul.f32 %v814, %v745
        %v817 = vadd.f32 %v785, %v815
        %v818 = vadd.f32 %v786, %v816
        %vm819 = vcmask 130048
        %v821 = vsel %vm819, %v784, 0
        %v824 = vsel %vm819, %v817, 0
        %v827 = vsel %vm819, %v818, 0
        %829 = vmatprep.subr.mxu0 0.0
        %830 = vmatpush1.xpose.msra.mxu0 0.0
        %831 = vmatprep.subr.mxu0 0.0
        %832 = vmatpush1.xpose.msra.mxu0 0.0
        %833 = vmatprep.subr.mxu0 0.0
        %834 = vmatpush1.xpose.msra.mxu0 0.0
        %835 = vmatprep.subr.mxu0 0.0
        %836 = vmatpush1.xpose.msra.mxu0 0.0
        %837 = vmatprep.subr.mxu0 0.0
        %838 = vmatpush1.xpose.msra.mxu0 0.0
        %839 = vmatprep.subr.mxu0 0.0
        %840 = vmatpush1.xpose.msra.mxu0 0.0
        %841 = vmatprep.subr.mxu0 0.0
        %842 = vmatpush1.xpose.msra.mxu0 0.0
        %843 = vmatprep.subr.mxu0 0.0
        %844 = vmatpush1.xpose.msra.mxu0 0.0
        %845 = vmatprep.subr.mxu0 0.0
        %846 = vmatpush1.xpose.msra.mxu0 0.0
        %847 = vmatprep.subr.mxu0 0.0
        %848 = vmatpush1.xpose.msra.mxu0 0.0
        %849 = vmatprep.subr.mxu0 0.0
        %850 = vmatpush1.xpose.msra.mxu0 0.0
        %851 = vmatprep.subr.mxu0 0.0
        %852 = vmatpush1.xpose.msra.mxu0 0.0
        %853 = vmatprep.subr.mxu0 0.0
        %854 = vmatpush1.xpose.msra.mxu0 0.0
        %855 = vmatprep.subr.mxu0 0.0
        %856 = vmatpush1.xpose.msra.mxu0 0.0
        %857 = vmatprep.subr.mxu0 0.0
        %858 = vmatpush1.xpose.msra.mxu0 %v827
        %859 = vmatprep.subr.mxu0 0.0
        %860 = vmatpush1.xpose.msra.mxu0 %v824
        %861 = vmatprep.subr.mxu0 0.0
        %862 = vmatpush2.xpose.msra.mxu0 0.0
        %863 = vmatprep.subr.mxu0 0.0
        %864 = vmatpush2.xpose.msra.mxu0 0.0
        %865 = vmatprep.subr.mxu0 0.0
        %866 = vmatpush2.xpose.msra.mxu0 0.0
        %867 = vmatprep.subr.mxu0 0.0
        %868 = vmatpush2.xpose.msra.mxu0 0.0
        %869 = vmatprep.subr.mxu0 0.0
        %870 = vmatpush2.xpose.msra.mxu0 0.0
        %871 = vmatprep.subr.mxu0 0.0
        %872 = vmatpush2.xpose.msra.mxu0 0.0
        %873 = vmatprep.subr.mxu0 0.0
        %874 = vmatpush2.xpose.msra.mxu0 0.0
        %875 = vmatprep.subr.mxu0 0.0
        %876 = vmatpush2.xpose.msra.mxu0 0.0
        %877 = vmatprep.subr.mxu0 0.0
        %878 = vmatpush2.xpose.msra.mxu0 0.0
        %879 = vmatprep.subr.mxu0 0.0
        %880 = vmatpush2.xpose.msra.mxu0 0.0
        %881 = vmatprep.subr.mxu0 0.0
        %882 = vmatpush2.xpose.msra.mxu0 0.0
        %883 = vmatprep.subr.mxu0 0.0
        %884 = vmatpush2.xpose.msra.mxu0 0.0
        %885 = vmatprep.subr.mxu0 0.0
        %886 = vmatpush2.xpose.msra.mxu0 0.0
        %887 = vmatprep.subr.mxu0 0.0
        %888 = vmatpush2.xpose.msra.mxu0 0.0
        %889 = vmatprep.subr.mxu0 0.0
        %890 = vmatpush2.xpose.msra.mxu0 0.0
        %891 = vmatprep.subr.mxu0 0.0
        %892 = vmatpush2.xpose.msra.mxu0 0.0
        %893 = vmatprep.mubr.f32.mxu0 0.0
        %894 = vmatmul.mubr.f32.gmra.mxu0 %v821
        %v895 = vpop.f32.mrf.mxu0
        %v896 = vadd.f32 0.0, %v895
        %v897 = vpop.f32.mrf.mxu0
        %898 = vdwg.mxu0
        %v899 = vsel %vm819, %v896, -inf
        %900 = vmax.xlane.f32.xlu0 %v899
        %v901 = vpop.xlane.xlu0 %900
        %v902 = vsub.f32 %v896, %v901
        %v903 = vmul.f32 %v902, 1.442695
        %v904 = vpow.pop %v903
        %v905 = vsel %vm819, %v904, 0.0
        %906 = vadd.xlane.f32.xlu0 %v905
        %v907 = vpop.xlane.xlu0 %906
        %v908 = vrcp.pop %v907
        %v909 = vmul.f32 %v904, %v908
        %910 = vst.msk [vmem:[%s459] sm:$0xff] %vm819, %v909
        %913 = vrot.lane.b32.xlu0 %v733, 64
        %v914 = vpop.permute.xlu0 %913
        %915 = vrot.lane.b32.xlu0 %v738, 64
        %v916 = vpop.permute.xlu0 %915
        %v920 = vsel %vm819, %v909, 0
        %922 = vmatprep.subr.mxu0 0.0
        %923 = vmatpush1.msra.mxu0 0.0
        %924 = vmatprep.subr.mxu0 0.0
        %925 = vmatpush1.msra.mxu0 0.0
        %926 = vmatprep.subr.mxu0 0.0
        %927 = vmatpush1.msra.mxu0 0.0
        %928 = vmatprep.subr.mxu0 0.0
        %929 = vmatpush1.msra.mxu0 0.0
        %930 = vmatprep.subr.mxu0 0.0
        %931 = vmatpush1.msra.mxu0 0.0
        %932 = vmatprep.subr.mxu0 0.0
        %933 = vmatpush1.msra.mxu0 0.0
        %934 = vmatprep.subr.mxu0 0.0
        %935 = vmatpush1.msra.mxu0 0.0
        %936 = vmatprep.subr.mxu0 0.0
        %937 = vmatpush1.msra.mxu0 0.0
        %938 = vmatprep.subr.mxu0 0.0
        %939 = vmatpush1.msra.mxu0 0.0
        %940 = vmatprep.subr.mxu0 0.0
        %941 = vmatpush1.msra.mxu0 0.0
        %942 = vmatprep.subr.mxu0 0.0
        %943 = vmatpush1.msra.mxu0 0.0
        %944 = vmatprep.subr.mxu0 0.0
        %945 = vmatpush1.msra.mxu0 0.0
        %946 = vmatprep.subr.mxu0 0.0
        %947 = vmatpush1.msra.mxu0 0.0
        %948 = vmatprep.subr.mxu0 0.0
        %949 = vmatpush1.msra.mxu0 0.0
        %950 = vmatprep.subr.mxu0 0.0
        %951 = vmatpush1.msra.mxu0 %v916
        %952 = vmatprep.subr.mxu0 0.0
        %953 = vmatpush1.msra.mxu0 %v914
        %954 = vmatprep.subr.mxu0 0.0
        %955 = vmatpush2.msra.mxu0 0.0
        %956 = vmatprep.subr.mxu0 0.0
        %957 = vmatpush2.msra.mxu0 0.0
        %958 = vmatprep.subr.mxu0 0.0
        %959 = vmatpush2.msra.mxu0 0.0
        %960 = vmatprep.subr.mxu0 0.0
        %961 = vmatpush2.msra.mxu0 0.0
        %962 = vmatprep.subr.mxu0 0.0
        %963 = vmatpush2.msra.mxu0 0.0
        %964 = vmatprep.subr.mxu0 0.0
        %965 = vmatpush2.msra.mxu0 0.0
        %966 = vmatprep.subr.mxu0 0.0
        %967 = vmatpush2.msra.mxu0 0.0
        %968 = vmatprep.subr.mxu0 0.0
        %969 = vmatpush2.msra.mxu0 0.0
        %970 = vmatprep.subr.mxu0 0.0
        %971 = vmatpush2.msra.mxu0 0.0
        %972 = vmatprep.subr.mxu0 0.0
        %973 = vmatpush2.msra.mxu0 0.0
        %974 = vmatprep.subr.mxu0 0.0
        %975 = vmatpush2.msra.mxu0 0.0
        %976 = vmatprep.subr.mxu0 0.0
        %977 = vmatpush2.msra.mxu0 0.0
        %978 = vmatprep.subr.mxu0 0.0
        %979 = vmatpush2.msra.mxu0 0.0
        %980 = vmatprep.subr.mxu0 0.0
        %981 = vmatpush2.msra.mxu0 0.0
        %982 = vmatprep.subr.mxu0 0.0
        %983 = vmatpush2.msra.mxu0 0.0
        %984 = vmatprep.subr.mxu0 0.0
        %985 = vmatpush2.msra.mxu0 0.0
        %986 = vmatprep.mubr.f32.mxu0 0.0
        %987 = vmatmul.mubr.f32.gmra.mxu0 %v920
        %v988 = vpop.f32.mrf.mxu0
        %v989 = vadd.f32 0.0, %v988
        %v990 = vpop.f32.mrf.mxu0
        %991 = vdwg.mxu0
        %993 = vrot.lane.b32.xlu0 %v743, 16
        %v994 = vpop.permute.xlu0 %993
        %v996 = vmul.f32 %v741, %v994
        %998 = vrot.lane.b32.xlu0 %v741, 112
        %v999 = vpop.permute.xlu0 %998
        %1001 = vrot.lane.b32.xlu0 %v999, 16
        %v1002 = vpop.permute.xlu0 %1001
        %v1003 = vsel %vm768, %v1002, %v999
        %1004 = vrot.lane.b32.xlu0 %v1003, 16
        %v1005 = vpop.permute.xlu0 %1004
        %v1006 = vsel %vm768, %v1005, %v999
        %1008 = vrot.lane.b32.xlu0 %v1006, 127
        %v1009 = vpop.permute.xlu0 %1008
        %1011 = vrot.lane.b32.xlu0 %v1006, 113
        %v1012 = vpop.permute.xlu0 %1011
        %v1014 = vsel %vm762, %v1009, %v1012
        %v1015 = vmul.f32 %v1014, %v742
        %1017 = vrot.lane.b32.xlu0 %v1015, 16
        %v1018 = vpop.permute.xlu0 %1017
        %v1020 = vadd.f32 %v996, %v1018
        %1023 = vrot.lane.b32.xlu0 %v746, 16
        %v1024 = vpop.permute.xlu0 %1023
        %1025 = vrot.lane.b32.xlu0 %v747, 16
        %v1026 = vpop.permute.xlu0 %1025
        %v1029 = vmul.f32 %v733, %v1024
        %v1030 = vmul.f32 %v738, %v1026
        %1031 = vrot.lane.b32.xlu0 %v733, 112
        %v1032 = vpop.permute.xlu0 %1031
        %1033 = vrot.lane.b32.xlu0 %v738, 112
        %v1034 = vpop.permute.xlu0 %1033
        %1037 = vrot.lane.b32.xlu0 %v1032, 16
        %v1038 = vpop.permute.xlu0 %1037
        %v1039 = vsel %vm768, %v1038, %v1032
        %1040 = vrot.lane.b32.xlu0 %v1034, 16
        %v1041 = vpop.permute.xlu0 %1040
        %v1042 = vsel %vm768, %v1041, %v1034
        %1043 = vrot.lane.b32.xlu0 %v1039, 16
        %v1044 = vpop.permute.xlu0 %1043
        %1045 = vrot.lane.b32.xlu0 %v1042, 16
        %v1046 = vpop.permute.xlu0 %1045
        %v1047 = vsel %vm768, %v1044, %v1032
        %v1048 = vsel %vm768, %v1046, %v1034
        %1051 = vrot.lane.b32.xlu0 %v1047, 127
        %v1052 = vpop.permute.xlu0 %1051
        %1053 = vrot.lane.b32.xlu0 %v1048, 127
        %v1054 = vpop.permute.xlu0 %1053
        %1057 = vrot.lane.b32.xlu0 %v1047, 113
        %v1058 = vpop.permute.xlu0 %1057
        %1059 = vrot.lane.b32.xlu0 %v1048, 113
        %v1060 = vpop.permute.xlu0 %1059
        %v1063 = vsel %vm762, %v1052, %v1058
        %v1064 = vsel %vm762, %v1054, %v1060
        %v1065 = vmul.f32 %v1063, %v744
        %v1066 = vmul.f32 %v1064, %v745
        %1069 = vrot.lane.b32.xlu0 %v1065, 16
        %v1070 = vpop.permute.xlu0 %1069
        %1071 = vrot.lane.b32.xlu0 %v1066, 16
        %v1072 = vpop.permute.xlu0 %1071
        %v1075 = vadd.f32 %v1029, %v1070
        %v1076 = vadd.f32 %v1030, %v1072
        %1078 = vrot.lane.b32.xlu0 %v1020, 112
        %v1079 = vpop.permute.xlu0 %1078
        %1082 = vrot.lane.b32.xlu0 %v1075, 112
        %v1083 = vpop.permute.xlu0 %1082
        %1084 = vrot.lane.b32.xlu0 %v1076, 112
        %v1085 = vpop.permute.xlu0 %1084
        %v1086 = vsel %vm819, %v1079, 0
        %v1088 = vsel %vm819, %v1083, 0
        %v1090 = vsel %vm819, %v1085, 0
        %1092 = vmatprep.subr.mxu0 0.0
        %1093 = vmatpush1.xpose.msra.mxu0 0.0
        %1094 = vmatprep.subr.mxu0 0.0
        %1095 = vmatpush1.xpose.msra.mxu0 0.0
        %1096 = vmatprep.subr.mxu0 0.0
        %1097 = vmatpush1.xpose.msra.mxu0 0.0
        %1098 = vmatprep.subr.mxu0 0.0
        %1099 = vmatpush1.xpose.msra.mxu0 0.0
        %1100 = vmatprep.subr.mxu0 0.0
        %1101 = vmatpush1.xpose.msra.mxu0 0.0
        %1102 = vmatprep.subr.mxu0 0.0
        %1103 = vmatpush1.xpose.msra.mxu0 0.0
        %1104 = vmatprep.subr.mxu0 0.0
        %1105 = vmatpush1.xpose.msra.mxu0 0.0
        %1106 = vmatprep.subr.mxu0 0.0
        %1107 = vmatpush1.xpose.msra.mxu0 0.0
        %1108 = vmatprep.subr.mxu0 0.0
        %1109 = vmatpush1.xpose.msra.mxu0 0.0
        %1110 = vmatprep.subr.mxu0 0.0
        %1111 = vmatpush1.xpose.msra.mxu0 0.0
        %1112 = vmatprep.subr.mxu0 0.0
        %1113 = vmatpush1.xpose.msra.mxu0 0.0
        %1114 = vmatprep.subr.mxu0 0.0
        %1115 = vmatpush1.xpose.msra.mxu0 0.0
        %1116 = vmatprep.subr.mxu0 0.0
        %1117 = vmatpush1.xpose.msra.mxu0 0.0
        %1118 = vmatprep.subr.mxu0 0.0
        %1119 = vmatpush1.xpose.msra.mxu0 0.0
        %1120 = vmatprep.subr.mxu0 0.0
        %1121 = vmatpush1.xpose.msra.mxu0 %v1090
        %1122 = vmatprep.subr.mxu0 0.0
        %1123 = vmatpush1.xpose.msra.mxu0 %v1088
        %1124 = vmatprep.subr.mxu0 0.0
        %1125 = vmatpush2.xpose.msra.mxu0 0.0
        %1126 = vmatprep.subr.mxu0 0.0
        %1127 = vmatpush2.xpose.msra.mxu0 0.0
        %1128 = vmatprep.subr.mxu0 0.0
        %1129 = vmatpush2.xpose.msra.mxu0 0.0
        %1130 = vmatprep.subr.mxu0 0.0
        %1131 = vmatpush2.xpose.msra.mxu0 0.0
        %1132 = vmatprep.subr.mxu0 0.0
        %1133 = vmatpush2.xpose.msra.mxu0 0.0
        %1134 = vmatprep.subr.mxu0 0.0
        %1135 = vmatpush2.xpose.msra.mxu0 0.0
        %1136 = vmatprep.subr.mxu0 0.0
        %1137 = vmatpush2.xpose.msra.mxu0 0.0
        %1138 = vmatprep.subr.mxu0 0.0
        %1139 = vmatpush2.xpose.msra.mxu0 0.0
        %1140 = vmatprep.subr.mxu0 0.0
        %1141 = vmatpush2.xpose.msra.mxu0 0.0
        %1142 = vmatprep.subr.mxu0 0.0
        %1143 = vmatpush2.xpose.msra.mxu0 0.0
        %1144 = vmatprep.subr.mxu0 0.0
        %1145 = vmatpush2.xpose.msra.mxu0 0.0
        %1146 = vmatprep.subr.mxu0 0.0
        %1147 = vmatpush2.xpose.msra.mxu0 0.0
        %1148 = vmatprep.subr.mxu0 0.0
        %1149 = vmatpush2.xpose.msra.mxu0 0.0
        %1150 = vmatprep.subr.mxu0 0.0
        %1151 = vmatpush2.xpose.msra.mxu0 0.0
        %1152 = vmatprep.subr.mxu0 0.0
        %1153 = vmatpush2.xpose.msra.mxu0 0.0
        %1154 = vmatprep.subr.mxu0 0.0
        %1155 = vmatpush2.xpose.msra.mxu0 0.0
        %1156 = vmatprep.mubr.f32.mxu0 0.0
        %1157 = vmatmul.mubr.f32.gmra.mxu0 %v1086
        %v1158 = vpop.f32.mrf.mxu0
        %v1159 = vadd.f32 0.0, %v1158
        %v1160 = vpop.f32.mrf.mxu0
        %1161 = vdwg.mxu0
        %v1162 = vsel %vm819, %v1159, -inf
        %1163 = vmax.xlane.f32.xlu0 %v1162
        %v1164 = vpop.xlane.xlu0 %1163
        %v1165 = vsub.f32 %v1159, %v1164
        %v1166 = vmul.f32 %v1165, 1.442695
        %v1167 = vpow.pop %v1166
        %v1168 = vsel %vm819, %v1167, 0.0
        %1169 = vadd.xlane.f32.xlu0 %v1168
        %v1170 = vpop.xlane.xlu0 %1169
        %v1171 = vrcp.pop %v1170
        %v1172 = vmul.f32 %v1167, %v1171
        %s1173 = scalar_lea.vmem %s459, 8 [#allocation4]
        %1174 = vst.msk [vmem:[%s1173] sm:$0xff] %vm819, %v1172
        %1175 = vrot.lane.b32.xlu0 %v733, 48
        %v1176 = vpop.permute.xlu0 %1175
        %1177 = vrot.lane.b32.xlu0 %v738, 48
        %v1178 = vpop.permute.xlu0 %1177
        %v1182 = vsel %vm819, %v1172, 0
        %1184 = vmatprep.subr.mxu0 0.0
        %1185 = vmatpush1.msra.mxu0 0.0
        %1186 = vmatprep.subr.mxu0 0.0
        %1187 = vmatpush1.msra.mxu0 0.0
        %1188 = vmatprep.subr.mxu0 0.0
        %1189 = vmatpush1.msra.mxu0 0.0
        %1190 = vmatprep.subr.mxu0 0.0
        %1191 = vmatpush1.msra.mxu0 0.0
        %1192 = vmatprep.subr.mxu0 0.0
        %1193 = vmatpush1.msra.mxu0 0.0
        %1194 = vmatprep.subr.mxu0 0.0
        %1195 = vmatpush1.msra.mxu0 0.0
        %1196 = vmatprep.subr.mxu0 0.0
        %1197 = vmatpush1.msra.mxu0 0.0
        %1198 = vmatprep.subr.mxu0 0.0
        %1199 = vmatpush1.msra.mxu0 0.0
        %1200 = vmatprep.subr.mxu0 0.0
        %1201 = vmatpush1.msra.mxu0 0.0
        %1202 = vmatprep.subr.mxu0 0.0
        %1203 = vmatpush1.msra.mxu0 0.0
        %1204 = vmatprep.subr.mxu0 0.0
        %1205 = vmatpush1.msra.mxu0 0.0
        %1206 = vmatprep.subr.mxu0 0.0
        %1207 = vmatpush1.msra.mxu0 0.0
        %1208 = vmatprep.subr.mxu0 0.0
        %1209 = vmatpush1.msra.mxu0 0.0
        %1210 = vmatprep.subr.mxu0 0.0
        %1211 = vmatpush1.msra.mxu0 0.0
        %1212 = vmatprep.subr.mxu0 0.0
        %1213 = vmatpush1.msra.mxu0 %v1178
        %1214 = vmatprep.subr.mxu0 0.0
        %1215 = vmatpush1.msra.mxu0 %v1176
        %1216 = vmatprep.subr.mxu0 0.0
        %1217 = vmatpush2.msra.mxu0 0.0
        %1218 = vmatprep.subr.mxu0 0.0
        %1219 = vmatpush2.msra.mxu0 0.0
        %1220 = vmatprep.subr.mxu0 0.0
        %1221 = vmatpush2.msra.mxu0 0.0
        %1222 = vmatprep.subr.mxu0 0.0
        %1223 = vmatpush2.msra.mxu0 0.0
        %1224 = vmatprep.subr.mxu0 0.0
        %1225 = vmatpush2.msra.mxu0 0.0
        %1226 = vmatprep.subr.mxu0 0.0
        %1227 = vmatpush2.msra.mxu0 0.0
        %1228 = vmatprep.subr.mxu0 0.0
        %1229 = vmatpush2.msra.mxu0 0.0
        %1230 = vmatprep.subr.mxu0 0.0
        %1231 = vmatpush2.msra.mxu0 0.0
        %1232 = vmatprep.subr.mxu0 0.0
        %1233 = vmatpush2.msra.mxu0 0.0
        %1234 = vmatprep.subr.mxu0 0.0
        %1235 = vmatpush2.msra.mxu0 0.0
        %1236 = vmatprep.subr.mxu0 0.0
        %1237 = vmatpush2.msra.mxu0 0.0
        %1238 = vmatprep.subr.mxu0 0.0
        %1239 = vmatpush2.msra.mxu0 0.0
        %1240 = vmatprep.subr.mxu0 0.0
        %1241 = vmatpush2.msra.mxu0 0.0
        %1242 = vmatprep.subr.mxu0 0.0
        %1243 = vmatpush2.msra.mxu0 0.0
        %1244 = vmatprep.subr.mxu0 0.0
        %1245 = vmatpush2.msra.mxu0 0.0
        %1246 = vmatprep.subr.mxu0 0.0
        %1247 = vmatpush2.msra.mxu0 0.0
        %1248 = vmatprep.mubr.f32.mxu0 0.0
        %1249 = vmatmul.mubr.f32.gmra.mxu0 %v1182
        %v1250 = vpop.f32.mrf.mxu0
        %v1251 = vadd.f32 0.0, %v1250
        %v1252 = vpop.f32.mrf.mxu0
        %1253 = vdwg.mxu0
        %1258 = vrot.lane.b32.xlu0 %v763, 112
        %v1259 = vpop.permute.xlu0 %1258
        %1260 = vrot.lane.b32.xlu0 %v764, 112
        %v1261 = vpop.permute.xlu0 %1260
        %1262 = vrot.lane.b32.xlu0 %v765, 112
        %v1263 = vpop.permute.xlu0 %1262
        %1264 = vrot.lane.b32.xlu0 %v766, 112
        %v1265 = vpop.permute.xlu0 %1264
        %v1267 = vsel %vm819, %v1251, 0
        %v1269 = vsel %vm819, %v1259, 0
        %v1271 = vsel %vm819, %v1261, 0
        %v1273 = vsel %vm819, %v1263, 0
        %v1275 = vsel %vm819, %v1265, 0
        %1277 = vmatprep.subr.mxu0 0.0
        %1278 = vmatpush1.xpose.msra.mxu0 0.0
        %1279 = vmatprep.subr.mxu0 0.0
        %1280 = vmatpush1.xpose.msra.mxu0 0.0
        %1281 = vmatprep.subr.mxu0 0.0
        %1282 = vmatpush1.xpose.msra.mxu0 0.0
        %1283 = vmatprep.subr.mxu0 0.0
        %1284 = vmatpush1.xpose.msra.mxu0 0.0
        %1285 = vmatprep.subr.mxu0 0.0
        %1286 = vmatpush1.xpose.msra.mxu0 0.0
        %1287 = vmatprep.subr.mxu0 0.0
        %1288 = vmatpush1.xpose.msra.mxu0 0.0
        %1289 = vmatprep.subr.mxu0 0.0
        %1290 = vmatpush1.xpose.msra.mxu0 0.0
        %1291 = vmatprep.subr.mxu0 0.0
        %1292 = vmatpush1.xpose.msra.mxu0 0.0
        %1293 = vmatprep.subr.mxu0 0.0
        %1294 = vmatpush1.xpose.msra.mxu0 0.0
        %1295 = vmatprep.subr.mxu0 0.0
        %1296 = vmatpush1.xpose.msra.mxu0 0.0
        %1297 = vmatprep.subr.mxu0 0.0
        %1298 = vmatpush1.xpose.msra.mxu0 0.0
        %1299 = vmatprep.subr.mxu0 0.0
        %1300 = vmatpush1.xpose.msra.mxu0 0.0
        %1301 = vmatprep.subr.mxu0 0.0
        %1302 = vmatpush1.xpose.msra.mxu0 %v1275
        %1303 = vmatprep.subr.mxu0 0.0
        %1304 = vmatpush1.xpose.msra.mxu0 %v1273
        %1305 = vmatprep.subr.mxu0 0.0
        %1306 = vmatpush1.xpose.msra.mxu0 %v1271
        %1307 = vmatprep.subr.mxu0 0.0
        %1308 = vmatpush1.xpose.msra.mxu0 %v1269
        %1309 = vmatprep.subr.mxu0 0.0
        %1310 = vmatpush2.xpose.msra.mxu0 0.0
        %1311 = vmatprep.subr.mxu0 0.0
        %1312 = vmatpush2.xpose.msra.mxu0 0.0
        %1313 = vmatprep.subr.mxu0 0.0
        %1314 = vmatpush2.xpose.msra.mxu0 0.0
        %1315 = vmatprep.subr.mxu0 0.0
        %1316 = vmatpush2.xpose.msra.mxu0 0.0
        %1317 = vmatprep.subr.mxu0 0.0
        %1318 = vmatpush2.xpose.msra.mxu0 0.0
        %1319 = vmatprep.subr.mxu0 0.0
        %1320 = vmatpush2.xpose.msra.mxu0 0.0
        %1321 = vmatprep.subr.mxu0 0.0
        %1322 = vmatpush2.xpose.msra.mxu0 0.0
        %1323 = vmatprep.subr.mxu0 0.0
        %1324 = vmatpush2.xpose.msra.mxu0 0.0
        %1325 = vmatprep.subr.mxu0 0.0
        %1326 = vmatpush2.xpose.msra.mxu0 0.0
        %1327 = vmatprep.subr.mxu0 0.0
        %1328 = vmatpush2.xpose.msra.mxu0 0.0
        %1329 = vmatprep.subr.mxu0 0.0
        %1330 = vmatpush2.xpose.msra.mxu0 0.0
        %1331 = vmatprep.subr.mxu0 0.0
        %1332 = vmatpush2.xpose.msra.mxu0 0.0
        %1333 = vmatprep.subr.mxu0 0.0
        %1334 = vmatpush2.xpose.msra.mxu0 0.0
        %1335 = vmatprep.subr.mxu0 0.0
        %1336 = vmatpush2.xpose.msra.mxu0 0.0
        %1337 = vmatprep.subr.mxu0 0.0
        %1338 = vmatpush2.xpose.msra.mxu0 0.0
        %1339 = vmatprep.subr.mxu0 0.0
        %1340 = vmatpush2.xpose.msra.mxu0 0.0
        %1341 = vmatprep.mubr.f32.mxu0 0.0
        %1342 = vmatmul.mubr.f32.gmra.mxu0 %v1267
        %v1343 = vpop.f32.mrf.mxu0
        %v1344 = vadd.f32 0.0, %v1343
        %v1345 = vpop.f32.mrf.mxu0
        %1346 = vdwg.mxu0
        %v1348 = vsel %vm819, %v989, 0
        %v1350 = vsel %vm819, %v763, 0
        %v1352 = vsel %vm819, %v764, 0
        %v1354 = vsel %vm819, %v765, 0
        %v1356 = vsel %vm819, %v766, 0
        %1358 = vmatprep.subr.mxu0 0.0
        %1359 = vmatpush1.xpose.msra.mxu0 0.0
        %1360 = vmatprep.subr.mxu0 0.0
        %1361 = vmatpush1.xpose.msra.mxu0 0.0
        %1362 = vmatprep.subr.mxu0 0.0
        %1363 = vmatpush1.xpose.msra.mxu0 0.0
        %1364 = vmatprep.subr.mxu0 0.0
        %1365 = vmatpush1.xpose.msra.mxu0 0.0
        %1366 = vmatprep.subr.mxu0 0.0
        %1367 = vmatpush1.xpose.msra.mxu0 0.0
        %1368 = vmatprep.subr.mxu0 0.0
        %1369 = vmatpush1.xpose.msra.mxu0 0.0
        %1370 = vmatprep.subr.mxu0 0.0
        %1371 = vmatpush1.xpose.msra.mxu0 0.0
        %1372 = vmatprep.subr.mxu0 0.0
        %1373 = vmatpush1.xpose.msra.mxu0 0.0
        %1374 = vmatprep.subr.mxu0 0.0
        %1375 = vmatpush1.xpose.msra.mxu0 0.0
        %1376 = vmatprep.subr.mxu0 0.0
        %1377 = vmatpush1.xpose.msra.mxu0 0.0
        %1378 = vmatprep.subr.mxu0 0.0
        %1379 = vmatpush1.xpose.msra.mxu0 0.0
        %1380 = vmatprep.subr.mxu0 0.0
        %1381 = vmatpush1.xpose.msra.mxu0 0.0
        %1382 = vmatprep.subr.mxu0 0.0
        %1383 = vmatpush1.xpose.msra.mxu0 %v1356
        %1384 = vmatprep.subr.mxu0 0.0
        %1385 = vmatpush1.xpose.msra.mxu0 %v1354
        %1386 = vmatprep.subr.mxu0 0.0
        %1387 = vmatpush1.xpose.msra.mxu0 %v1352
        %1388 = vmatprep.subr.mxu0 0.0
        %1389 = vmatpush1.xpose.msra.mxu0 %v1350
        %1390 = vmatprep.subr.mxu0 0.0
        %1391 = vmatpush2.xpose.msra.mxu0 0.0
        %1392 = vmatprep.subr.mxu0 0.0
        %1393 = vmatpush2.xpose.msra.mxu0 0.0
        %1394 = vmatprep.subr.mxu0 0.0
        %1395 = vmatpush2.xpose.msra.mxu0 0.0
        %1396 = vmatprep.subr.mxu0 0.0
        %1397 = vmatpush2.xpose.msra.mxu0 0.0
        %1398 = vmatprep.subr.mxu0 0.0
        %1399 = vmatpush2.xpose.msra.mxu0 0.0
        %1400 = vmatprep.subr.mxu0 0.0
        %1401 = vmatpush2.xpose.msra.mxu0 0.0
        %1402 = vmatprep.subr.mxu0 0.0
        %1403 = vmatpush2.xpose.msra.mxu0 0.0
        %1404 = vmatprep.subr.mxu0 0.0
        %1405 = vmatpush2.xpose.msra.mxu0 0.0
        %1406 = vmatprep.subr.mxu0 0.0
        %1407 = vmatpush2.xpose.msra.mxu0 0.0
        %1408 = vmatprep.subr.mxu0 0.0
        %1409 = vmatpush2.xpose.msra.mxu0 0.0
        %1410 = vmatprep.subr.mxu0 0.0
        %1411 = vmatpush2.xpose.msra.mxu0 0.0
        %1412 = vmatprep.subr.mxu0 0.0
        %1413 = vmatpush2.xpose.msra.mxu0 0.0
        %1414 = vmatprep.subr.mxu0 0.0
        %1415 = vmatpush2.xpose.msra.mxu0 0.0
        %1416 = vmatprep.subr.mxu0 0.0
        %1417 = vmatpush2.xpose.msra.mxu0 0.0
        %1418 = vmatprep.subr.mxu0 0.0
        %1419 = vmatpush2.xpose.msra.mxu0 0.0
        %1420 = vmatprep.subr.mxu0 0.0
        %1421 = vmatpush2.xpose.msra.mxu0 0.0
        %1422 = vmatprep.mubr.f32.mxu0 0.0
        %1423 = vmatmul.mubr.f32.gmra.mxu0 %v1348
        %v1424 = vpop.f32.mrf.mxu0
        %v1425 = vadd.f32 %v1344, %v1424
        %v1426 = vpop.f32.mrf.mxu0
        %1427 = vdwg.mxu0
        %1428 = vrot.lane.b32.xlu0 %v743, 32
        %v1429 = vpop.permute.xlu0 %1428
        %v1431 = vmul.f32 %v741, %v1429
        %1432 = vrot.lane.b32.xlu0 %v741, 96
        %v1433 = vpop.permute.xlu0 %1432
        %1435 = vrot.lane.b32.xlu0 %v1433, 16
        %v1436 = vpop.permute.xlu0 %1435
        %v1437 = vsel %vm768, %v1436, %v1433
        %1438 = vrot.lane.b32.xlu0 %v1437, 16
        %v1439 = vpop.permute.xlu0 %1438
        %v1440 = vsel %vm768, %v1439, %v1433
        %1442 = vrot.lane.b32.xlu0 %v1440, 127
        %v1443 = vpop.permute.xlu0 %1442
        %1445 = vrot.lane.b32.xlu0 %v1440, 113
        %v1446 = vpop.permute.xlu0 %1445
        %v1448 = vsel %vm762, %v1443, %v1446
        %v1449 = vmul.f32 %v1448, %v742
        %1451 = vrot.lane.b32.xlu0 %v1449, 32
        %v1452 = vpop.permute.xlu0 %1451
        %v1454 = vadd.f32 %v1431, %v1452
        %1455 = vrot.lane.b32.xlu0 %v746, 32
        %v1456 = vpop.permute.xlu0 %1455
        %1457 = vrot.lane.b32.xlu0 %v747, 32
        %v1458 = vpop.permute.xlu0 %1457
        %v1461 = vmul.f32 %v733, %v1456
        %v1462 = vmul.f32 %v738, %v1458
        %1463 = vrot.lane.b32.xlu0 %v733, 96
        %v1464 = vpop.permute.xlu0 %1463
        %1465 = vrot.lane.b32.xlu0 %v738, 96
        %v1466 = vpop.permute.xlu0 %1465
        %1469 = vrot.lane.b32.xlu0 %v1464, 16
        %v1470 = vpop.permute.xlu0 %1469
        %v1471 = vsel %vm768, %v1470, %v1464
        %1472 = vrot.lane.b32.xlu0 %v1466, 16
        %v1473 = vpop.permute.xlu0 %1472
        %v1474 = vsel %vm768, %v1473, %v1466
        %1475 = vrot.lane.b32.xlu0 %v1471, 16
        %v1476 = vpop.permute.xlu0 %1475
        %1477 = vrot.lane.b32.xlu0 %v1474, 16
        %v1478 = vpop.permute.xlu0 %1477
        %v1479 = vsel %vm768, %v1476, %v1464
        %v1480 = vsel %vm768, %v1478, %v1466
        %1483 = vrot.lane.b32.xlu0 %v1479, 127
        %v1484 = vpop.permute.xlu0 %1483
        %1485 = vrot.lane.b32.xlu0 %v1480, 127
        %v1486 = vpop.permute.xlu0 %1485
        %1489 = vrot.lane.b32.xlu0 %v1479, 113
        %v1490 = vpop.permute.xlu0 %1489
        %1491 = vrot.lane.b32.xlu0 %v1480, 113
        %v1492 = vpop.permute.xlu0 %1491
        %v1495 = vsel %vm762, %v1484, %v1490
        %v1496 = vsel %vm762, %v1486, %v1492
        %v1497 = vmul.f32 %v1495, %v744
        %v1498 = vmul.f32 %v1496, %v745
        %1501 = vrot.lane.b32.xlu0 %v1497, 32
        %v1502 = vpop.permute.xlu0 %1501
        %1503 = vrot.lane.b32.xlu0 %v1498, 32
        %v1504 = vpop.permute.xlu0 %1503
        %v1507 = vadd.f32 %v1461, %v1502
        %v1508 = vadd.f32 %v1462, %v1504
        %1510 = vrot.lane.b32.xlu0 %v1454, 96
        %v1511 = vpop.permute.xlu0 %1510
        %1514 = vrot.lane.b32.xlu0 %v1507, 96
        %v1515 = vpop.permute.xlu0 %1514
        %1516 = vrot.lane.b32.xlu0 %v1508, 96
        %v1517 = vpop.permute.xlu0 %1516
        %v1518 = vsel %vm819, %v1511, 0
        %v1520 = vsel %vm819, %v1515, 0
        %v1522 = vsel %vm819, %v1517, 0
        %1524 = vmatprep.subr.mxu0 0.0
        %1525 = vmatpush1.xpose.msra.mxu0 0.0
        %1526 = vmatprep.subr.mxu0 0.0
        %1527 = vmatpush1.xpose.msra.mxu0 0.0
        %1528 = vmatprep.subr.mxu0 0.0
        %1529 = vmatpush1.xpose.msra.mxu0 0.0
        %1530 = vmatprep.subr.mxu0 0.0
        %1531 = vmatpush1.xpose.msra.mxu0 0.0
        %1532 = vmatprep.subr.mxu0 0.0
        %1533 = vmatpush1.xpose.msra.mxu0 0.0
        %1534 = vmatprep.subr.mxu0 0.0
        %1535 = vmatpush1.xpose.msra.mxu0 0.0
        %1536 = vmatprep.subr.mxu0 0.0
        %1537 = vmatpush1.xpose.msra.mxu0 0.0
        %1538 = vmatprep.subr.mxu0 0.0
        %1539 = vmatpush1.xpose.msra.mxu0 0.0
        %1540 = vmatprep.subr.mxu0 0.0
        %1541 = vmatpush1.xpose.msra.mxu0 0.0
        %1542 = vmatprep.subr.mxu0 0.0
        %1543 = vmatpush1.xpose.msra.mxu0 0.0
        %1544 = vmatprep.subr.mxu0 0.0
        %1545 = vmatpush1.xpose.msra.mxu0 0.0
        %1546 = vmatprep.subr.mxu0 0.0
        %1547 = vmatpush1.xpose.msra.mxu0 0.0
        %1548 = vmatprep.subr.mxu0 0.0
        %1549 = vmatpush1.xpose.msra.mxu0 0.0
        %1550 = vmatprep.subr.mxu0 0.0
        %1551 = vmatpush1.xpose.msra.mxu0 0.0
        %1552 = vmatprep.subr.mxu0 0.0
        %1553 = vmatpush1.xpose.msra.mxu0 %v1522
        %1554 = vmatprep.subr.mxu0 0.0
        %1555 = vmatpush1.xpose.msra.mxu0 %v1520
        %1556 = vmatprep.subr.mxu0 0.0
        %1557 = vmatpush2.xpose.msra.mxu0 0.0
        %1558 = vmatprep.subr.mxu0 0.0
        %1559 = vmatpush2.xpose.msra.mxu0 0.0
        %1560 = vmatprep.subr.mxu0 0.0
        %1561 = vmatpush2.xpose.msra.mxu0 0.0
        %1562 = vmatprep.subr.mxu0 0.0
        %1563 = vmatpush2.xpose.msra.mxu0 0.0
        %1564 = vmatprep.subr.mxu0 0.0
        %1565 = vmatpush2.xpose.msra.mxu0 0.0
        %1566 = vmatprep.subr.mxu0 0.0
        %1567 = vmatpush2.xpose.msra.mxu0 0.0
        %1568 = vmatprep.subr.mxu0 0.0
        %1569 = vmatpush2.xpose.msra.mxu0 0.0
        %1570 = vmatprep.subr.mxu0 0.0
        %1571 = vmatpush2.xpose.msra.mxu0 0.0
        %1572 = vmatprep.subr.mxu0 0.0
        %1573 = vmatpush2.xpose.msra.mxu0 0.0
        %1574 = vmatprep.subr.mxu0 0.0
        %1575 = vmatpush2.xpose.msra.mxu0 0.0
        %1576 = vmatprep.subr.mxu0 0.0
        %1577 = vmatpush2.xpose.msra.mxu0 0.0
        %1578 = vmatprep.subr.mxu0 0.0
        %1579 = vmatpush2.xpose.msra.mxu0 0.0
        %1580 = vmatprep.subr.mxu0 0.0
        %1581 = vmatpush2.xpose.msra.mxu0 0.0
        %1582 = vmatprep.subr.mxu0 0.0
        %1583 = vmatpush2.xpose.msra.mxu0 0.0
        %1584 = vmatprep.subr.mxu0 0.0
        %1585 = vmatpush2.xpose.msra.mxu0 0.0
        %1586 = vmatprep.subr.mxu0 0.0
        %1587 = vmatpush2.xpose.msra.mxu0 0.0
        %1588 = vmatprep.mubr.f32.mxu0 0.0
        %1589 = vmatmul.mubr.f32.gmra.mxu0 %v1518
        %v1590 = vpop.f32.mrf.mxu0
        %v1591 = vadd.f32 0.0, %v1590
        %v1592 = vpop.f32.mrf.mxu0
        %1593 = vdwg.mxu0
        %v1594 = vsel %vm819, %v1591, -inf
        %1595 = vmax.xlane.f32.xlu0 %v1594
        %v1596 = vpop.xlane.xlu0 %1595
        %v1597 = vsub.f32 %v1591, %v1596
        %v1598 = vmul.f32 %v1597, 1.442695
        %v1599 = vpow.pop %v1598
        %v1600 = vsel %vm819, %v1599, 0.0
        %1601 = vadd.xlane.f32.xlu0 %v1600
        %v1602 = vpop.xlane.xlu0 %1601
        %v1603 = vrcp.pop %v1602
        %v1604 = vmul.f32 %v1599, %v1603
        %s1605 = scalar_lea.vmem %s459, 16 [#allocation4]
        %1606 = vst.msk [vmem:[%s1605] sm:$0xff] %vm819, %v1604
        %1607 = vrot.lane.b32.xlu0 %v733, 32
        %v1608 = vpop.permute.xlu0 %1607
        %1609 = vrot.lane.b32.xlu0 %v738, 32
        %v1610 = vpop.permute.xlu0 %1609
        %v1614 = vsel %vm819, %v1604, 0
        %1616 = vmatprep.subr.mxu0 0.0
        %1617 = vmatpush1.msra.mxu0 0.0
        %1618 = vmatprep.subr.mxu0 0.0
        %1619 = vmatpush1.msra.mxu0 0.0
        %1620 = vmatprep.subr.mxu0 0.0
        %1621 = vmatpush1.msra.mxu0 0.0
        %1622 = vmatprep.subr.mxu0 0.0
        %1623 = vmatpush1.msra.mxu0 0.0
        %1624 = vmatprep.subr.mxu0 0.0
        %1625 = vmatpush1.msra.mxu0 0.0
        %1626 = vmatprep.subr.mxu0 0.0
        %1627 = vmatpush1.msra.mxu0 0.0
        %1628 = vmatprep.subr.mxu0 0.0
        %1629 = vmatpush1.msra.mxu0 0.0
        %1630 = vmatprep.subr.mxu0 0.0
        %1631 = vmatpush1.msra.mxu0 0.0
        %1632 = vmatprep.subr.mxu0 0.0
        %1633 = vmatpush1.msra.mxu0 0.0
        %1634 = vmatprep.subr.mxu0 0.0
        %1635 = vmatpush1.msra.mxu0 0.0
        %1636 = vmatprep.subr.mxu0 0.0
        %1637 = vmatpush1.msra.mxu0 0.0
        %1638 = vmatprep.subr.mxu0 0.0
        %1639 = vmatpush1.msra.mxu0 0.0
        %1640 = vmatprep.subr.mxu0 0.0
        %1641 = vmatpush1.msra.mxu0 0.0
        %1642 = vmatprep.subr.mxu0 0.0
        %1643 = vmatpush1.msra.mxu0 0.0
        %1644 = vmatprep.subr.mxu0 0.0
        %1645 = vmatpush1.msra.mxu0 %v1610
        %1646 = vmatprep.subr.mxu0 0.0
        %1647 = vmatpush1.msra.mxu0 %v1608
        %1648 = vmatprep.subr.mxu0 0.0
        %1649 = vmatpush2.msra.mxu0 0.0
        %1650 = vmatprep.subr.mxu0 0.0
        %1651 = vmatpush2.msra.mxu0 0.0
        %1652 = vmatprep.subr.mxu0 0.0
        %1653 = vmatpush2.msra.mxu0 0.0
        %1654 = vmatprep.subr.mxu0 0.0
        %1655 = vmatpush2.msra.mxu0 0.0
        %1656 = vmatprep.subr.mxu0 0.0
        %1657 = vmatpush2.msra.mxu0 0.0
        %1658 = vmatprep.subr.mxu0 0.0
        %1659 = vmatpush2.msra.mxu0 0.0
        %1660 = vmatprep.subr.mxu0 0.0
        %1661 = vmatpush2.msra.mxu0 0.0
        %1662 = vmatprep.subr.mxu0 0.0
        %1663 = vmatpush2.msra.mxu0 0.0
        %1664 = vmatprep.subr.mxu0 0.0
        %1665 = vmatpush2.msra.mxu0 0.0
        %1666 = vmatprep.subr.mxu0 0.0
        %1667 = vmatpush2.msra.mxu0 0.0
        %1668 = vmatprep.subr.mxu0 0.0
        %1669 = vmatpush2.msra.mxu0 0.0
        %1670 = vmatprep.subr.mxu0 0.0
        %1671 = vmatpush2.msra.mxu0 0.0
        %1672 = vmatprep.subr.mxu0 0.0
        %1673 = vmatpush2.msra.mxu0 0.0
        %1674 = vmatprep.subr.mxu0 0.0
        %1675 = vmatpush2.msra.mxu0 0.0
        %1676 = vmatprep.subr.mxu0 0.0
        %1677 = vmatpush2.msra.mxu0 0.0
        %1678 = vmatprep.subr.mxu0 0.0
        %1679 = vmatpush2.msra.mxu0 0.0
        %1680 = vmatprep.mubr.f32.mxu0 0.0
        %1681 = vmatmul.mubr.f32.gmra.mxu0 %v1614
        %v1682 = vpop.f32.mrf.mxu0
        %v1683 = vadd.f32 0.0, %v1682
        %v1684 = vpop.f32.mrf.mxu0
        %1685 = vdwg.mxu0
        %1686 = vrot.lane.b32.xlu0 %v763, 96
        %v1687 = vpop.permute.xlu0 %1686
        %1688 = vrot.lane.b32.xlu0 %v764, 96
        %v1689 = vpop.permute.xlu0 %1688
        %1690 = vrot.lane.b32.xlu0 %v765, 96
        %v1691 = vpop.permute.xlu0 %1690
        %1692 = vrot.lane.b32.xlu0 %v766, 96
        %v1693 = vpop.permute.xlu0 %1692
        %v1695 = vsel %vm819, %v1683, 0
        %v1697 = vsel %vm819, %v1687, 0
        %v1699 = vsel %vm819, %v1689, 0
        %v1701 = vsel %vm819, %v1691, 0
        %v1703 = vsel %vm819, %v1693, 0
        %1705 = vmatprep.subr.mxu0 0.0
        %1706 = vmatpush1.xpose.msra.mxu0 0.0
        %1707 = vmatprep.subr.mxu0 0.0
        %1708 = vmatpush1.xpose.msra.mxu0 0.0
        %1709 = vmatprep.subr.mxu0 0.0
        %1710 = vmatpush1.xpose.msra.mxu0 0.0
        %1711 = vmatprep.subr.mxu0 0.0
        %1712 = vmatpush1.xpose.msra.mxu0 0.0
        %1713 = vmatprep.subr.mxu0 0.0
        %1714 = vmatpush1.xpose.msra.mxu0 0.0
        %1715 = vmatprep.subr.mxu0 0.0
        %1716 = vmatpush1.xpose.msra.mxu0 0.0
        %1717 = vmatprep.subr.mxu0 0.0
        %1718 = vmatpush1.xpose.msra.mxu0 0.0
        %1719 = vmatprep.subr.mxu0 0.0
        %1720 = vmatpush1.xpose.msra.mxu0 0.0
        %1721 = vmatprep.subr.mxu0 0.0
        %1722 = vmatpush1.xpose.msra.mxu0 0.0
        %1723 = vmatprep.subr.mxu0 0.0
        %1724 = vmatpush1.xpose.msra.mxu0 0.0
        %1725 = vmatprep.subr.mxu0 0.0
        %1726 = vmatpush1.xpose.msra.mxu0 0.0
        %1727 = vmatprep.subr.mxu0 0.0
        %1728 = vmatpush1.xpose.msra.mxu0 0.0
        %1729 = vmatprep.subr.mxu0 0.0
        %1730 = vmatpush1.xpose.msra.mxu0 %v1703
        %1731 = vmatprep.subr.mxu0 0.0
        %1732 = vmatpush1.xpose.msra.mxu0 %v1701
        %1733 = vmatprep.subr.mxu0 0.0
        %1734 = vmatpush1.xpose.msra.mxu0 %v1699
        %1735 = vmatprep.subr.mxu0 0.0
        %1736 = vmatpush1.xpose.msra.mxu0 %v1697
        %1737 = vmatprep.subr.mxu0 0.0
        %1738 = vmatpush2.xpose.msra.mxu0 0.0
        %1739 = vmatprep.subr.mxu0 0.0
        %1740 = vmatpush2.xpose.msra.mxu0 0.0
        %1741 = vmatprep.subr.mxu0 0.0
        %1742 = vmatpush2.xpose.msra.mxu0 0.0
        %1743 = vmatprep.subr.mxu0 0.0
        %1744 = vmatpush2.xpose.msra.mxu0 0.0
        %1745 = vmatprep.subr.mxu0 0.0
        %1746 = vmatpush2.xpose.msra.mxu0 0.0
        %1747 = vmatprep.subr.mxu0 0.0
        %1748 = vmatpush2.xpose.msra.mxu0 0.0
        %1749 = vmatprep.subr.mxu0 0.0
        %1750 = vmatpush2.xpose.msra.mxu0 0.0
        %1751 = vmatprep.subr.mxu0 0.0
        %1752 = vmatpush2.xpose.msra.mxu0 0.0
        %1753 = vmatprep.subr.mxu0 0.0
        %1754 = vmatpush2.xpose.msra.mxu0 0.0
        %1755 = vmatprep.subr.mxu0 0.0
        %1756 = vmatpush2.xpose.msra.mxu0 0.0
        %1757 = vmatprep.subr.mxu0 0.0
        %1758 = vmatpush2.xpose.msra.mxu0 0.0
        %1759 = vmatprep.subr.mxu0 0.0
        %1760 = vmatpush2.xpose.msra.mxu0 0.0
        %1761 = vmatprep.subr.mxu0 0.0
        %1762 = vmatpush2.xpose.msra.mxu0 0.0
        %1763 = vmatprep.subr.mxu0 0.0
        %1764 = vmatpush2.xpose.msra.mxu0 0.0
        %1765 = vmatprep.subr.mxu0 0.0
        %1766 = vmatpush2.xpose.msra.mxu0 0.0
        %1767 = vmatprep.subr.mxu0 0.0
        %1768 = vmatpush2.xpose.msra.mxu0 0.0
        %1769 = vmatprep.mubr.f32.mxu0 0.0
        %1770 = vmatmul.mubr.f32.gmra.mxu0 %v1695
        %v1771 = vpop.f32.mrf.mxu0
        %v1772 = vadd.f32 0.0, %v1771
        %v1773 = vpop.f32.mrf.mxu0
        %1774 = vdwg.mxu0
        %v1775 = vadd.f32 %v1425, %v1772
        %1776 = vrot.lane.b32.xlu0 %v743, 48
        %v1777 = vpop.permute.xlu0 %1776
        %v1779 = vmul.f32 %v741, %v1777
        %1780 = vrot.lane.b32.xlu0 %v741, 80
        %v1781 = vpop.permute.xlu0 %1780
        %1783 = vrot.lane.b32.xlu0 %v1781, 16
        %v1784 = vpop.permute.xlu0 %1783
        %v1785 = vsel %vm768, %v1784, %v1781
        %1786 = vrot.lane.b32.xlu0 %v1785, 16
        %v1787 = vpop.permute.xlu0 %1786
        %v1788 = vsel %vm768, %v1787, %v1781
        %1790 = vrot.lane.b32.xlu0 %v1788, 127
        %v1791 = vpop.permute.xlu0 %1790
        %1793 = vrot.lane.b32.xlu0 %v1788, 113
        %v1794 = vpop.permute.xlu0 %1793
        %v1796 = vsel %vm762, %v1791, %v1794
        %v1797 = vmul.f32 %v1796, %v742
        %1799 = vrot.lane.b32.xlu0 %v1797, 48
        %v1800 = vpop.permute.xlu0 %1799
        %v1802 = vadd.f32 %v1779, %v1800
        %1803 = vrot.lane.b32.xlu0 %v746, 48
        %v1804 = vpop.permute.xlu0 %1803
        %1805 = vrot.lane.b32.xlu0 %v747, 48
        %v1806 = vpop.permute.xlu0 %1805
        %v1809 = vmul.f32 %v733, %v1804
        %v1810 = vmul.f32 %v738, %v1806
        %1811 = vrot.lane.b32.xlu0 %v733, 80
        %v1812 = vpop.permute.xlu0 %1811
        %1813 = vrot.lane.b32.xlu0 %v738, 80
        %v1814 = vpop.permute.xlu0 %1813
        %1817 = vrot.lane.b32.xlu0 %v1812, 16
        %v1818 = vpop.permute.xlu0 %1817
        %v1819 = vsel %vm768, %v1818, %v1812
        %1820 = vrot.lane.b32.xlu0 %v1814, 16
        %v1821 = vpop.permute.xlu0 %1820
        %v1822 = vsel %vm768, %v1821, %v1814
        %1823 = vrot.lane.b32.xlu0 %v1819, 16
        %v1824 = vpop.permute.xlu0 %1823
        %1825 = vrot.lane.b32.xlu0 %v1822, 16
        %v1826 = vpop.permute.xlu0 %1825
        %v1827 = vsel %vm768, %v1824, %v1812
        %v1828 = vsel %vm768, %v1826, %v1814
        %1831 = vrot.lane.b32.xlu0 %v1827, 127
        %v1832 = vpop.permute.xlu0 %1831
        %1833 = vrot.lane.b32.xlu0 %v1828, 127
        %v1834 = vpop.permute.xlu0 %1833
        %1837 = vrot.lane.b32.xlu0 %v1827, 113
        %v1838 = vpop.permute.xlu0 %1837
        %1839 = vrot.lane.b32.xlu0 %v1828, 113
        %v1840 = vpop.permute.xlu0 %1839
        %v1843 = vsel %vm762, %v1832, %v1838
        %v1844 = vsel %vm762, %v1834, %v1840
        %v1845 = vmul.f32 %v1843, %v744
        %v1846 = vmul.f32 %v1844, %v745
        %1849 = vrot.lane.b32.xlu0 %v1845, 48
        %v1850 = vpop.permute.xlu0 %1849
        %1851 = vrot.lane.b32.xlu0 %v1846, 48
        %v1852 = vpop.permute.xlu0 %1851
        %v1855 = vadd.f32 %v1809, %v1850
        %v1856 = vadd.f32 %v1810, %v1852
        %1858 = vrot.lane.b32.xlu0 %v1802, 80
        %v1859 = vpop.permute.xlu0 %1858
        %1862 = vrot.lane.b32.xlu0 %v1855, 80
        %v1863 = vpop.permute.xlu0 %1862
        %1864 = vrot.lane.b32.xlu0 %v1856, 80
        %v1865 = vpop.permute.xlu0 %1864
        %v1866 = vsel %vm819, %v1859, 0
        %v1868 = vsel %vm819, %v1863, 0
        %v1870 = vsel %vm819, %v1865, 0
        %1872 = vmatprep.subr.mxu0 0.0
        %1873 = vmatpush1.xpose.msra.mxu0 0.0
        %1874 = vmatprep.subr.mxu0 0.0
        %1875 = vmatpush1.xpose.msra.mxu0 0.0
        %1876 = vmatprep.subr.mxu0 0.0
        %1877 = vmatpush1.xpose.msra.mxu0 0.0
        %1878 = vmatprep.subr.mxu0 0.0
        %1879 = vmatpush1.xpose.msra.mxu0 0.0
        %1880 = vmatprep.subr.mxu0 0.0
        %1881 = vmatpush1.xpose.msra.mxu0 0.0
        %1882 = vmatprep.subr.mxu0 0.0
        %1883 = vmatpush1.xpose.msra.mxu0 0.0
        %1884 = vmatprep.subr.mxu0 0.0
        %1885 = vmatpush1.xpose.msra.mxu0 0.0
        %1886 = vmatprep.subr.mxu0 0.0
        %1887 = vmatpush1.xpose.msra.mxu0 0.0
        %1888 = vmatprep.subr.mxu0 0.0
        %1889 = vmatpush1.xpose.msra.mxu0 0.0
        %1890 = vmatprep.subr.mxu0 0.0
        %1891 = vmatpush1.xpose.msra.mxu0 0.0
        %1892 = vmatprep.subr.mxu0 0.0
        %1893 = vmatpush1.xpose.msra.mxu0 0.0
        %1894 = vmatprep.subr.mxu0 0.0
        %1895 = vmatpush1.xpose.msra.mxu0 0.0
        %1896 = vmatprep.subr.mxu0 0.0
        %1897 = vmatpush1.xpose.msra.mxu0 0.0
        %1898 = vmatprep.subr.mxu0 0.0
        %1899 = vmatpush1.xpose.msra.mxu0 0.0
        %1900 = vmatprep.subr.mxu0 0.0
        %1901 = vmatpush1.xpose.msra.mxu0 %v1870
        %1902 = vmatprep.subr.mxu0 0.0
        %1903 = vmatpush1.xpose.msra.mxu0 %v1868
        %1904 = vmatprep.subr.mxu0 0.0
        %1905 = vmatpush2.xpose.msra.mxu0 0.0
        %1906 = vmatprep.subr.mxu0 0.0
        %1907 = vmatpush2.xpose.msra.mxu0 0.0
        %1908 = vmatprep.subr.mxu0 0.0
        %1909 = vmatpush2.xpose.msra.mxu0 0.0
        %1910 = vmatprep.subr.mxu0 0.0
        %1911 = vmatpush2.xpose.msra.mxu0 0.0
        %1912 = vmatprep.subr.mxu0 0.0
        %1913 = vmatpush2.xpose.msra.mxu0 0.0
        %1914 = vmatprep.subr.mxu0 0.0
        %1915 = vmatpush2.xpose.msra.mxu0 0.0
        %1916 = vmatprep.subr.mxu0 0.0
        %1917 = vmatpush2.xpose.msra.mxu0 0.0
        %1918 = vmatprep.subr.mxu0 0.0
        %1919 = vmatpush2.xpose.msra.mxu0 0.0
        %1920 = vmatprep.subr.mxu0 0.0
        %1921 = vmatpush2.xpose.msra.mxu0 0.0
        %1922 = vmatprep.subr.mxu0 0.0
        %1923 = vmatpush2.xpose.msra.mxu0 0.0
        %1924 = vmatprep.subr.mxu0 0.0
        %1925 = vmatpush2.xpose.msra.mxu0 0.0
        %1926 = vmatprep.subr.mxu0 0.0
        %1927 = vmatpush2.xpose.msra.mxu0 0.0
        %1928 = vmatprep.subr.mxu0 0.0
        %1929 = vmatpush2.xpose.msra.mxu0 0.0
        %1930 = vmatprep.subr.mxu0 0.0
        %1931 = vmatpush2.xpose.msra.mxu0 0.0
        %1932 = vmatprep.subr.mxu0 0.0
        %1933 = vmatpush2.xpose.msra.mxu0 0.0
        %1934 = vmatprep.subr.mxu0 0.0
        %1935 = vmatpush2.xpose.msra.mxu0 0.0
        %1936 = vmatprep.mubr.f32.mxu0 0.0
        %1937 = vmatmul.mubr.f32.gmra.mxu0 %v1866
        %v1938 = vpop.f32.mrf.mxu0
        %v1939 = vadd.f32 0.0, %v1938
        %v1940 = vpop.f32.mrf.mxu0
        %1941 = vdwg.mxu0
        %v1942 = vsel %vm819, %v1939, -inf
        %1943 = vmax.xlane.f32.xlu0 %v1942
        %v1944 = vpop.xlane.xlu0 %1943
        %v1945 = vsub.f32 %v1939, %v1944
        %v1946 = vmul.f32 %v1945, 1.442695
        %v1947 = vpow.pop %v1946
        %v1948 = vsel %vm819, %v1947, 0.0
        %1949 = vadd.xlane.f32.xlu0 %v1948
        %v1950 = vpop.xlane.xlu0 %1949
        %v1951 = vrcp.pop %v1950
        %v1952 = vmul.f32 %v1947, %v1951
        %s1953 = scalar_lea.vmem %s459, 24 [#allocation4]
        %1954 = vst.msk [vmem:[%s1953] sm:$0xff] %vm819, %v1952
        %1955 = vrot.lane.b32.xlu0 %v733, 16
        %v1956 = vpop.permute.xlu0 %1955
        %1957 = vrot.lane.b32.xlu0 %v738, 16
        %v1958 = vpop.permute.xlu0 %1957
        %v1962 = vsel %vm819, %v1952, 0
        %1964 = vmatprep.subr.mxu0 0.0
        %1965 = vmatpush1.msra.mxu0 0.0
        %1966 = vmatprep.subr.mxu0 0.0
        %1967 = vmatpush1.msra.mxu0 0.0
        %1968 = vmatprep.subr.mxu0 0.0
        %1969 = vmatpush1.msra.mxu0 0.0
        %1970 = vmatprep.subr.mxu0 0.0
        %1971 = vmatpush1.msra.mxu0 0.0
        %1972 = vmatprep.subr.mxu0 0.0
        %1973 = vmatpush1.msra.mxu0 0.0
        %1974 = vmatprep.subr.mxu0 0.0
        %1975 = vmatpush1.msra.mxu0 0.0
        %1976 = vmatprep.subr.mxu0 0.0
        %1977 = vmatpush1.msra.mxu0 0.0
        %1978 = vmatprep.subr.mxu0 0.0
        %1979 = vmatpush1.msra.mxu0 0.0
        %1980 = vmatprep.subr.mxu0 0.0
        %1981 = vmatpush1.msra.mxu0 0.0
        %1982 = vmatprep.subr.mxu0 0.0
        %1983 = vmatpush1.msra.mxu0 0.0
        %1984 = vmatprep.subr.mxu0 0.0
        %1985 = vmatpush1.msra.mxu0 0.0
        %1986 = vmatprep.subr.mxu0 0.0
        %1987 = vmatpush1.msra.mxu0 0.0
        %1988 = vmatprep.subr.mxu0 0.0
        %1989 = vmatpush1.msra.mxu0 0.0
        %1990 = vmatprep.subr.mxu0 0.0
        %1991 = vmatpush1.msra.mxu0 0.0
        %1992 = vmatprep.subr.mxu0 0.0
        %1993 = vmatpush1.msra.mxu0 %v1958
        %1994 = vmatprep.subr.mxu0 0.0
        %1995 = vmatpush1.msra.mxu0 %v1956
        %1996 = vmatprep.subr.mxu0 0.0
        %1997 = vmatpush2.msra.mxu0 0.0
        %1998 = vmatprep.subr.mxu0 0.0
        %1999 = vmatpush2.msra.mxu0 0.0
        %2000 = vmatprep.subr.mxu0 0.0
        %2001 = vmatpush2.msra.mxu0 0.0
        %2002 = vmatprep.subr.mxu0 0.0
        %2003 = vmatpush2.msra.mxu0 0.0
        %2004 = vmatprep.subr.mxu0 0.0
        %2005 = vmatpush2.msra.mxu0 0.0
        %2006 = vmatprep.subr.mxu0 0.0
        %2007 = vmatpush2.msra.mxu0 0.0
        %2008 = vmatprep.subr.mxu0 0.0
        %2009 = vmatpush2.msra.mxu0 0.0
        %2010 = vmatprep.subr.mxu0 0.0
        %2011 = vmatpush2.msra.mxu0 0.0
        %2012 = vmatprep.subr.mxu0 0.0
        %2013 = vmatpush2.msra.mxu0 0.0
        %2014 = vmatprep.subr.mxu0 0.0
        %2015 = vmatpush2.msra.mxu0 0.0
        %2016 = vmatprep.subr.mxu0 0.0
        %2017 = vmatpush2.msra.mxu0 0.0
        %2018 = vmatprep.subr.mxu0 0.0
        %2019 = vmatpush2.msra.mxu0 0.0
        %2020 = vmatprep.subr.mxu0 0.0
        %2021 = vmatpush2.msra.mxu0 0.0
        %2022 = vmatprep.subr.mxu0 0.0
        %2023 = vmatpush2.msra.mxu0 0.0
        %2024 = vmatprep.subr.mxu0 0.0
        %2025 = vmatpush2.msra.mxu0 0.0
        %2026 = vmatprep.subr.mxu0 0.0
        %2027 = vmatpush2.msra.mxu0 0.0
        %2028 = vmatprep.mubr.f32.mxu0 0.0
        %2029 = vmatmul.mubr.f32.gmra.mxu0 %v1962
        %v2030 = vpop.f32.mrf.mxu0
        %v2031 = vadd.f32 0.0, %v2030
        %v2032 = vpop.f32.mrf.mxu0
        %2033 = vdwg.mxu0
        %2034 = vrot.lane.b32.xlu0 %v763, 80
        %v2035 = vpop.permute.xlu0 %2034
        %2036 = vrot.lane.b32.xlu0 %v764, 80
        %v2037 = vpop.permute.xlu0 %2036
        %2038 = vrot.lane.b32.xlu0 %v765, 80
        %v2039 = vpop.permute.xlu0 %2038
        %2040 = vrot.lane.b32.xlu0 %v766, 80
        %v2041 = vpop.permute.xlu0 %2040
        %v2043 = vsel %vm819, %v2031, 0
        %v2045 = vsel %vm819, %v2035, 0
        %v2047 = vsel %vm819, %v2037, 0
        %v2049 = vsel %vm819, %v2039, 0
        %v2051 = vsel %vm819, %v2041, 0
        %2053 = vmatprep.subr.mxu0 0.0
        %2054 = vmatpush1.xpose.msra.mxu0 0.0
        %2055 = vmatprep.subr.mxu0 0.0
        %2056 = vmatpush1.xpose.msra.mxu0 0.0
        %2057 = vmatprep.subr.mxu0 0.0
        %2058 = vmatpush1.xpose.msra.mxu0 0.0
        %2059 = vmatprep.subr.mxu0 0.0
        %2060 = vmatpush1.xpose.msra.mxu0 0.0
        %2061 = vmatprep.subr.mxu0 0.0
        %2062 = vmatpush1.xpose.msra.mxu0 0.0
        %2063 = vmatprep.subr.mxu0 0.0
        %2064 = vmatpush1.xpose.msra.mxu0 0.0
        %2065 = vmatprep.subr.mxu0 0.0
        %2066 = vmatpush1.xpose.msra.mxu0 0.0
        %2067 = vmatprep.subr.mxu0 0.0
        %2068 = vmatpush1.xpose.msra.mxu0 0.0
        %2069 = vmatprep.subr.mxu0 0.0
        %2070 = vmatpush1.xpose.msra.mxu0 0.0
        %2071 = vmatprep.subr.mxu0 0.0
        %2072 = vmatpush1.xpose.msra.mxu0 0.0
        %2073 = vmatprep.subr.mxu0 0.0
        %2074 = vmatpush1.xpose.msra.mxu0 0.0
        %2075 = vmatprep.subr.mxu0 0.0
        %2076 = vmatpush1.xpose.msra.mxu0 0.0
        %2077 = vmatprep.subr.mxu0 0.0
        %2078 = vmatpush1.xpose.msra.mxu0 %v2051
        %2079 = vmatprep.subr.mxu0 0.0
        %2080 = vmatpush1.xpose.msra.mxu0 %v2049
        %2081 = vmatprep.subr.mxu0 0.0
        %2082 = vmatpush1.xpose.msra.mxu0 %v2047
        %2083 = vmatprep.subr.mxu0 0.0
        %2084 = vmatpush1.xpose.msra.mxu0 %v2045
        %2085 = vmatprep.subr.mxu0 0.0
        %2086 = vmatpush2.xpose.msra.mxu0 0.0
        %2087 = vmatprep.subr.mxu0 0.0
        %2088 = vmatpush2.xpose.msra.mxu0 0.0
        %2089 = vmatprep.subr.mxu0 0.0
        %2090 = vmatpush2.xpose.msra.mxu0 0.0
        %2091 = vmatprep.subr.mxu0 0.0
        %2092 = vmatpush2.xpose.msra.mxu0 0.0
        %2093 = vmatprep.subr.mxu0 0.0
        %2094 = vmatpush2.xpose.msra.mxu0 0.0
        %2095 = vmatprep.subr.mxu0 0.0
        %2096 = vmatpush2.xpose.msra.mxu0 0.0
        %2097 = vmatprep.subr.mxu0 0.0
        %2098 = vmatpush2.xpose.msra.mxu0 0.0
        %2099 = vmatprep.subr.mxu0 0.0
        %2100 = vmatpush2.xpose.msra.mxu0 0.0
        %2101 = vmatprep.subr.mxu0 0.0
        %2102 = vmatpush2.xpose.msra.mxu0 0.0
        %2103 = vmatprep.subr.mxu0 0.0
        %2104 = vmatpush2.xpose.msra.mxu0 0.0
        %2105 = vmatprep.subr.mxu0 0.0
        %2106 = vmatpush2.xpose.msra.mxu0 0.0
        %2107 = vmatprep.subr.mxu0 0.0
        %2108 = vmatpush2.xpose.msra.mxu0 0.0
        %2109 = vmatprep.subr.mxu0 0.0
        %2110 = vmatpush2.xpose.msra.mxu0 0.0
        %2111 = vmatprep.subr.mxu0 0.0
        %2112 = vmatpush2.xpose.msra.mxu0 0.0
        %2113 = vmatprep.subr.mxu0 0.0
        %2114 = vmatpush2.xpose.msra.mxu0 0.0
        %2115 = vmatprep.subr.mxu0 0.0
        %2116 = vmatpush2.xpose.msra.mxu0 0.0
        %2117 = vmatprep.mubr.f32.mxu0 0.0
        %2118 = vmatmul.mubr.f32.gmra.mxu0 %v2043
        %v2119 = vpop.f32.mrf.mxu0
        %v2120 = vadd.f32 0.0, %v2119
        %v2121 = vpop.f32.mrf.mxu0
        %2122 = vdwg.mxu0
        %v2123 = vadd.f32 %v1775, %v2120
        %v2124 = vld [vmem:[%s9] sm:$0x1]
        %v2126 = vlaneseq
        %v2127 = vshrl.u32 %v2126, 7
        %v2128 = vsub.s32 0, %v2127
        %v2129 = vrot.slane %v2124, %v2128
        %v2131 = vadd.f32 %v2123, %v2129
        %2132 = vst.msk [vmem:[%s452] sm:$0xff] %vm498, %v2131
        %s2133 = sand.u32 %s277, 1
        %s2134 = scalar_lea.sflag [#allocation3], %s2133
        %s2135 = sand.u32 %s277, 1
        %s2136 = smul.addr %s2135, 8
        %s2137 = scalar_lea.vmem [#allocation2], %s2136
        %s2138 = sand.u32 %s303, 1
        %s2139 = scalar_lea.sflag [#allocation5], %s2138
        %s2140 = sand.u32 %s303, 1
        %s2141 = smul.addr %s2140, 32
        %s2142 = scalar_lea.vmem [#allocation4], %s2141
        // Predicated region
        $region61: #{tpu_custom_call.1} parent=59 // pred_check
          %p2143 = pneg %p287
        $region62: #{tpu_custom_call.1} parent=59 // pred_check_branch
          %2145 = sbr.rel (%p2143) target = $region64
        $region63: #{tpu_custom_call.1} parent=59 // pred_region
          %s2147 = ssub.s32 128, 128
          %2148 = vsyncadd %s2134, %s2147
          %s2149 = smul.addr %s29, 128
          %s2150 = scalar_lea.hbm %s10, %s2149
          %s2152 = sshll.u32 %s2137, 4
          %s2153 = int_to_ptr.vmem [resolvable:$true] %s2152
          %2155 = dma.vmem_to_hbm [thread:$0]  %s2153, 128, %s2150, %s2134
        $region64: #{tpu_custom_call.1} parent=59 // pred_fallthru
          _
        // Predicated region
        $region65: #{tpu_custom_call.1} parent=59 // pred_check
          %p2156 = pneg %p313
        $region66: #{tpu_custom_call.1} parent=59 // pred_check_branch
          %2158 = sbr.rel (%p2156) target = $region68
        $region67: #{tpu_custom_call.1} parent=59 // pred_region
          %s2160 = ssub.s32 512, 512
          %2161 = vsyncadd %s2139, %s2160
          %s2162 = smul.addr %s29, 4
          %s2163 = smul.addr %s2162, 128
          %s2164 = scalar_lea.hbm %s11, %s2163
          %s2165 = sshll.u32 %s2142, 4
          %s2166 = int_to_ptr.vmem [resolvable:$true] %s2165
          %2171 = dma.vmem_to_hbm [thread:$0]  %s2166, 512, %s2164, %s2139, 128, 128, 8
        $region68: #{tpu_custom_call.1} parent=59 // pred_fallthru
          _
      $region60: #{tpu_custom_call.1} parent=5 // pred_fallthru
        _
      %p2172 = scmp.le.s32.totalorder 2, %s24
      // Predicated region
      $region69: #{tpu_custom_call.1} parent=5 // pred_check
        %p2173 = pneg %p2172
      $region70: #{tpu_custom_call.1} parent=5 // pred_check_branch
        %2175 = sbr.rel (%p2173) target = $region72
      $region71: #{tpu_custom_call.1} parent=5 // pred_region
        %s2176 = ssub.s32 %s24, 2
        // Predicated region
        $region73: #{tpu_custom_call.1} parent=71 // pred_check
          %p2177 = pneg %p293
        $region74: #{tpu_custom_call.1} parent=71 // pred_check_branch
          %2179 = sbr.rel (%p2177) target = $region76
        $region75: #{tpu_custom_call.1} parent=71 // pred_region
          %s2180 = sand.u32 %s278, 1
          %s2181 = scalar_lea.sflag [#allocation3], %s2180
          %s2182 = sand.u32 %s278, 1
          %s2183 = smul.addr %s2182, 8
          %s2184 = scalar_lea.vmem [#allocation2], %s2183
          %2185 = dma.done %s2181, 128
        $region76: #{tpu_custom_call.1} parent=71 // pred_fallthru
          _
        // Predicated region
        $region77: #{tpu_custom_call.1} parent=71 // pred_check
          %p2186 = pneg %p319
        $region78: #{tpu_custom_call.1} parent=71 // pred_check_branch
          %2188 = sbr.rel (%p2186) target = $region80
        $region79: #{tpu_custom_call.1} parent=71 // pred_region
          %s2189 = sand.u32 %s304, 1
          %s2190 = scalar_lea.sflag [#allocation5], %s2189
          %s2191 = sand.u32 %s304, 1
          %s2192 = smul.addr %s2191, 32
          %s2193 = scalar_lea.vmem [#allocation4], %s2192
          %2194 = dma.done %s2190, 512
        $region80: #{tpu_custom_call.1} parent=71 // pred_fallthru
          _
      $region72: #{tpu_custom_call.1} parent=5 // pred_fallthru
        _
    $region6: #{tpu_custom_call.1} parent=1 // loop_footer
      %s28 = sadd.s32 1, %s24
    $region7: #{tpu_custom_call.1} parent=1 // loop_footer_branch
      %23 = sbr.rel target = $region3
    $region8: #{tpu_custom_call.1} parent=1 // loop_exit
      _
    %2195 = vsyncpa [#allocation3], 1
    %s2196 = scalar_lea.sflag [#allocation3], 1
    %2197 = vsyncpa %s2196, 1
    %2198 = vsyncpa [#allocation5], 1
    %s2199 = scalar_lea.sflag [#allocation5], 1
    %2200 = vsyncpa %s2199, 1

</llo_original>
